<compile_context>
chip_gen: v7x
topology: tpu7x:2x2x1
jax: 0.10.0
libtpu: 0.0.40
codegen_flags: <defaults>
</compile_context>

<pallas_src>
import jax
import jax.numpy as jnp
from jax import lax
from jax.experimental import pallas as pl
from jax.experimental.pallas import tpu as pltpu


# --------------------------- LSTM layer (fused bi-dir) ------------------------

def _make_lstm_layer_kernel(P, B, SC, H, apply_ln):
    """Kernel for one (bi)directional LSTM layer.  Grid = (direction, chunk).

    Refs per grid step:
      x_ref    : (P, SC*B, F)  input parts, rows time-major (t*B + b)
      wih_ref  : (P, F, 4H)    per-part input weights, gates packed on lanes
      whh_ref  : (H, 4H)       recurrent weights, gates packed on lanes
      b_ref    : (1, 4H)       fused bias b_ih + b_hh
      lnw/lnb  : (1, F)        LayerNorm affine (layer 0 only)
      out_ref  : (SC*B, H)     this direction's output slab for this chunk
      gx_sc    : (SC*B, 4H)    hoisted input-gate pre-activations (lane dense)
      h_sc/c_sc: (B, H)        recurrent state carried across chunks
    """
    G = 4 * H

    def kernel(*refs):
        if apply_ln:
            (x_ref, wih_ref, whh_ref, b_ref, lnw_ref, lnb_ref, out_ref,
             gx_sc, h_sc, c_sc) = refs
        else:
            (x_ref, wih_ref, whh_ref, b_ref, out_ref,
             gx_sc, h_sc, c_sc) = refs
            lnw_ref = lnb_ref = None

        d = pl.program_id(0)            # 0 = forward, 1 = backward

        # ---- hoisted input projection: one tall (rows,F)x(F,4H) matmul/part ---
        acc = None
        for p in range(P):
            xp = x_ref[p].astype(jnp.float32)                       # (SC*B, F)
            if apply_ln:                                            # fused LayerNorm
                mu = jnp.mean(xp, axis=-1, keepdims=True)
                var = jnp.mean(jnp.square(xp - mu), axis=-1, keepdims=True)
                xp = (xp - mu) * lax.rsqrt(var + 1e-5) * lnw_ref[...] + lnb_ref[...]
            mm = jnp.dot(xp, wih_ref[p], preferred_element_type=jnp.float32)
            acc = mm if acc is None else acc + mm
        gx_sc[...] = acc + b_ref[...]                               # (SC*B, 4H)

        # ---- recurrent state: zero only at the first chunk of each direction --
        @pl.when(pl.program_id(1) == 0)
        def _init():
            h_sc[...] = jnp.zeros_like(h_sc)
            c_sc[...] = jnp.zeros_like(c_sc)

        w_hh = whh_ref[...]                                         # hoisted load

        def step(lt, carry):
            # forward walks lt = 0..SC-1; backward walks SC-1-lt (no data flip).
            t_eff = lt + d * (SC - 1 - 2 * lt)
            row = pl.multiple_of(t_eff * B, B)
            h = h_sc[...]
            c = c_sc[...]
            # single 128-lane MXU call for all four gates
            gall = gx_sc[pl.ds(row, B), :] + jnp.dot(
                h, w_hh, preferred_element_type=jnp.float32)        # (B, 4H)
            i = jax.nn.sigmoid(gall[:, 0:H])
            f = jax.nn.sigmoid(gall[:, H:2 * H])
            g = jnp.tanh(gall[:, 2 * H:3 * H])
            o = jax.nn.sigmoid(gall[:, 3 * H:4 * H])
            c_new = f * c + i * g
            h_new = o * jnp.tanh(c_new)
            c_sc[...] = c_new
            h_sc[...] = h_new
            out_ref[pl.ds(row, B), :] = h_new.astype(out_ref.dtype)
            return carry

        lax.fori_loop(0, SC, step, 0, unroll=(SC <= 32))

    return kernel


def _pick_seq_chunk(S, B, target_rows=2048):
    """Largest divisor SC of S with SC*B <= target_rows and SC*B % 8 == 0."""
    if S * B <= target_rows:
        return S
    for sc in range(S, 0, -1):
        if S % sc == 0 and sc * B <= target_rows and (sc * B) % 8 == 0:
            return sc
    return S


def lstm_layer(x_parts, wih, whh, b, ln, *, B, S, H, D):
    P, N, F = x_parts.shape
    G = 4 * H
    SC = _pick_seq_chunk(S, B)
    nC = S // SC
    rows = SC * B
    apply_ln = ln is not None
    kernel = _make_lstm_layer_kernel(P, B, SC, H, apply_ln)

    def chunk_map(d, c):
        # Backward direction visits the sequence chunks in reverse order.
        return c + d * (nC - 1 - 2 * c)

    in_specs = [
        pl.BlockSpec((P, rows, F), lambda d, c: (0, chunk_map(d, c), 0)),
        pl.BlockSpec((None, P, F, G), lambda d, c: (d, 0, 0, 0)),
        pl.BlockSpec((None, H, G), lambda d, c: (d, 0, 0)),
        pl.BlockSpec((None, 1, G), lambda d, c: (d, 0, 0)),
    ]
    args = [x_parts, wih, whh, b]
    if apply_ln:
        lnw, lnb = ln
        in_specs += [pl.BlockSpec((1, F), lambda d, c: (0, 0)),
                     pl.BlockSpec((1, F), lambda d, c: (0, 0))]
        args += [lnw.reshape(1, F), lnb.reshape(1, F)]

    out_specs = pl.BlockSpec((None, rows, H),
                             lambda d, c: (d, chunk_map(d, c), 0))

    cost = pl.CostEstimate(
        flops=2 * D * N * G * (P * F + H),
        transcendentals=5 * D * N * H,
        bytes_accessed=4 * (P * N * F + D * N * H + D * G * (P * F + H)))

    return pl.pallas_call(
        kernel,
        out_shape=jax.ShapeDtypeStruct((D, N, H), jnp.float32),
        grid=(D, nC),
        in_specs=in_specs,
        out_specs=out_specs,
        scratch_shapes=[pltpu.VMEM((rows, G), jnp.float32),
                        pltpu.VMEM((B, H), jnp.float32),
                        pltpu.VMEM((B, H), jnp.float32)],
        compiler_params=pltpu.CompilerParams(
            dimension_semantics=("parallel", "arbitrary")),
        cost_estimate=cost,
    )(*args)


# ------------------------------- head kernel ---------------------------------

def _head_kernel(x_ref, w1_ref, b1_ref, w2_ref, b2_ref, o_ref):
    # fc1 (eval BatchNorm folded in) -> exact GELU -> (dropout = id) -> fc2.
    D = x_ref.shape[0]
    acc = None
    for p in range(D):
        mm = jnp.dot(x_ref[p].astype(jnp.float32), w1_ref[p],
                     preferred_element_type=jnp.float32)
        acc = mm if acc is None else acc + mm
    y = acc + b1_ref[...]
    y = 0.5 * y * (1.0 + lax.erf(y * 0.7071067811865476))
    o_ref[...] = (jnp.dot(y, w2_ref[...], preferred_element_type=jnp.float32)
                  + b2_ref[...]).astype(o_ref.dtype)


def head(x_parts, w1_parts, b1, w2p, b2p):
    Dp, N, H = x_parts.shape
    Cpad = w2p.shape[1]                       # padded to a multiple of 128 lanes
    TN = N if N <= 512 else 512               # row tile
    return pl.pallas_call(
        _head_kernel,
        out_shape=jax.ShapeDtypeStruct((N, Cpad), jnp.float32),
        grid=(pl.cdiv(N, TN),),
        in_specs=[
            pl.BlockSpec((Dp, TN, H), lambda r: (0, r, 0)),
            pl.BlockSpec((Dp, H, H), lambda r: (0, 0, 0)),
            pl.BlockSpec((1, H), lambda r: (0, 0)),
            pl.BlockSpec((H, Cpad), lambda r: (0, 0)),
            pl.BlockSpec((1, Cpad), lambda r: (0, 0)),
        ],
        out_specs=pl.BlockSpec((TN, Cpad), lambda r: (r, 0)),
        compiler_params=pltpu.CompilerParams(dimension_semantics=("parallel",)),
    )(x_parts, w1_parts, b1.reshape(1, H), w2p, b2p.reshape(1, Cpad))


# ------------------------------ forward wrapper -------------------------------

def slot_tagger_forward(params, tokens):
    B, S = tokens.shape
    emb = params["embedding"]
    H = params["hidden_size"]
    D = params["D"]

    # Embedding gather directly into flat time-major row order (row = t*B + b):
    # only the tiny int token matrix is transposed on the XLA side.
    tok_tm = jnp.transpose(tokens, (1, 0)).reshape(-1)
    x = jnp.take(emb, tok_tm, axis=0).astype(jnp.float32)          # (S*B, E)
    act = x[None]                                                  # (1, S*B, E)

    for layer in range(params["num_layers"]):
        wih, whh, b = params["lstm_packed"][layer]
        ln = (params["ln_w"], params["ln_b"]) if layer == 0 else None
        act = lstm_layer(act, wih, whh, b, ln, B=B, S=S, H=H, D=D)  # (D, S*B, H)

    y = head(act, params["head_w1"], params["head_b1"],
             params["head_w2"], params["head_b2"])                 # (S*B, Cpad)
    C = params["num_class_out"]
    y = y[:, :C]
    return jnp.transpose(y.reshape(S, B, C), (1, 2, 0))            # (B, C, S)


# ------------------------------ weight packing --------------------------------

def pack_params(params):
    """Pack gates lane-dense, fold eval BatchNorm into fc1, pad fc2 to 128 lanes."""
    D = params["D"]
    H = params["hidden_size"]
    E = params["embedding"].shape[1]
    packed = dict(params)

    lstm_packed = []
    for layer in range(params["num_layers"]):
        P = 1 if layer == 0 else D
        F = E if layer == 0 else H
        wih_dirs, whh_dirs, b_dirs = [], [], []
        for d in range(D):
            wih, whh, bih, bhh = params["lstm"][(layer, d)]         # PyTorch layout
            # (4H, P*F) -> transpose -> (P*F, 4H): gates [i|f|g|o] packed on lanes,
            # input dim split per part along the leading axis.
            wih_t = wih.T.reshape(P, F, 4 * H)
            whh_t = whh.T                                           # (H, 4H)
            b_t = (bih + bhh).reshape(1, 4 * H)
            wih_dirs.append(wih_t)
            whh_dirs.append(whh_t)
            b_dirs.append(b_t)
        lstm_packed.append((jnp.stack(wih_dirs),    # (D, P, F, 4H)
                            jnp.stack(whh_dirs),    # (D, H, 4H)
                            jnp.stack(b_dirs)))     # (D, 1, 4H)
    packed["lstm_packed"] = lstm_packed

    # Fold eval-mode BatchNorm1d into fc1.
    scale = params["bn_gamma"] * lax.rsqrt(params["bn_var"] + 1e-5)
    shift = params["bn_beta"] - params["bn_mean"] * scale
    w1 = (params["fc1_w"].T * scale[None, :]).reshape(D, H, H)      # (D, H, H)
    b1 = params["fc1_b"] * scale + shift
    # Pad fc2 output features to a multiple of 128 lanes for unmasked stores.
    C = params["fc2_w"].shape[0]
    Cpad = pl.cdiv(C, 128) * 128
    w2 = jnp.zeros((H, Cpad), jnp.float32).at[:, :C].set(params["fc2_w"].T)
    b2 = jnp.zeros((Cpad,), jnp.float32).at[:C].set(params["fc2_b"])
    packed["head_w1"] = w1
    packed["head_b1"] = b1
    packed["head_w2"] = w2
    packed["head_b2"] = b2
    packed["num_class_out"] = C
    return packed


# ----------------------------- pure-JAX reference -----------------------------

def ref_lstm_dir(x, wih, whh, bih, bhh):
    B, S, _ = x.shape
    H = whh.shape[1]
    h = jnp.zeros((B, H), jnp.float32)
    c = jnp.zeros((B, H), jnp.float32)
    outs = []
    for t in range(S):
        gates = x[:, t, :] @ wih.T + bih + h @ whh.T + bhh
        i = jax.nn.sigmoid(gates[:, 0:H])
        f = jax.nn.sigmoid(gates[:, H:2 * H])
        g = jnp.tanh(gates[:, 2 * H:3 * H])
        o = jax.nn.sigmoid(gates[:, 3 * H:4 * H])
        c = f * c + i * g
        h = o * jnp.tanh(c)
        outs.append(h)
    return jnp.stack(outs, axis=1)


def ref_forward(params, tokens):
    emb = jnp.take(params["embedding"], tokens, axis=0)
    mean = emb.mean(-1, keepdims=True)
    var = ((emb - mean) ** 2).mean(-1, keepdims=True)
    x = (emb - mean) / jnp.sqrt(var + 1e-5) * params["ln_w"] + params["ln_b"]
    inp = x
    for layer in range(params["num_layers"]):
        outs = []
        for d in range(params["D"]):
            xd = inp if d == 0 else inp[:, ::-1, :]
            wih, whh, bih, bhh = params["lstm"][(layer, d)]
            out = ref_lstm_dir(xd, wih, whh, bih, bhh)
            if d == 1:
                out = out[:, ::-1, :]
            outs.append(out)
        inp = jnp.concatenate(outs, axis=-1)
    y = inp @ params["fc1_w"].T + params["fc1_b"]
    scale = params["bn_gamma"] / jnp.sqrt(params["bn_var"] + 1e-5)
    shift = params["bn_beta"] - params["bn_mean"] * scale
    y = y * scale + shift
    y = 0.5 * y * (1.0 + lax.erf(y * 0.7071067811865476))
    y = y @ params["fc2_w"].T + params["fc2_b"]
    return jnp.transpose(y, (0, 2, 1))


# ------------------------------- parameter init --------------------------------

def init_params(key, vocab, embed_dim, hidden, num_layers, bidirectional, num_class):
    D = 2 if bidirectional else 1
    C = num_class + 1
    keys = iter(jax.random.split(key, 64))
    u = lambda k, shape, s: jax.random.uniform(k, shape, jnp.float32, -s, s)
    params = {
        "num_layers": num_layers,
        "D": D,
        "hidden_size": hidden,
        "embedding": jax.random.normal(next(keys), (vocab, embed_dim), jnp.float32),
        "ln_w": jnp.ones((embed_dim,), jnp.float32),
        "ln_b": jnp.zeros((embed_dim,), jnp.float32),
        "bn_gamma": jnp.ones((hidden,), jnp.float32),
        "bn_beta": jnp.zeros((hidden,), jnp.float32),
        "bn_mean": jnp.zeros((hidden,), jnp.float32),
        "bn_var": jnp.ones((hidden,), jnp.float32),
    }
    s = 1.0 / jnp.sqrt(hidden)
    lstm = {}
    for layer in range(num_layers):
        in_size = embed_dim if layer == 0 else D * hidden
        for d in range(D):
            lstm[(layer, d)] = (
                u(next(keys), (4 * hidden, in_size), s),   # W_ih
                u(next(keys), (4 * hidden, hidden), s),    # W_hh
                u(next(keys), (4 * hidden,), s),           # b_ih
                u(next(keys), (4 * hidden,), s),           # b_hh
            )
    params["lstm"] = lstm
    s1 = 1.0 / jnp.sqrt(D * hidden)
    params["fc1_w"] = u(next(keys), (hidden, D * hidden), s1)
    params["fc1_b"] = u(next(keys), (hidden,), s1)
    s2 = 1.0 / jnp.sqrt(hidden)
    params["fc2_w"] = u(next(keys), (C, hidden), s2)
    params["fc2_b"] = u(next(keys), (C,), s2)
    return params


# ------------------------------------ main -------------------------------------

if __name__ == "__main__":
    B, S = 2, 8
    VOCAB, EMBED, HIDDEN = 50, 32, 32
    NUM_LAYERS, BIDIRECTIONAL, NUM_CLASS = 2, True, 9

    key = jax.random.PRNGKey(0)
    pkey, tkey = jax.random.split(key)
    params = init_params(pkey, VOCAB, EMBED, HIDDEN, NUM_LAYERS, BIDIRECTIONAL, NUM_CLASS)
    packed = pack_params(params)
    tokens = jax.random.randint(tkey, (B, S), 0, VOCAB, dtype=jnp.int32)

    out = jax.block_until_ready(slot_tagger_forward(packed, tokens))
    assert out.shape == (B, NUM_CLASS + 1, S), out.shape

    ref = jax.block_until_ready(ref_forward(params, tokens))
    assert jnp.allclose(out, ref, rtol=1e-4, atol=1e-4), float(jnp.abs(out - ref).max())

    print("KERNEL_OK")
</pallas_src>

<mosaic_0001>
module attributes {stable_mosaic.version = 11 : i64} {
  func.func @kernel(%arg0: i32, %arg1: i32, %arg2: memref<1x16x32xf32, #tpu.memory_space<vmem>>, %arg3: memref<1x1x32x128xf32, #tpu.memory_space<vmem>>, %arg4: memref<1x32x128xf32, #tpu.memory_space<vmem>>, %arg5: memref<1x1x128xf32, #tpu.memory_space<vmem>>, %arg6: memref<1x32xf32, #tpu.memory_space<vmem>>, %arg7: memref<1x32xf32, #tpu.memory_space<vmem>>, %arg8: memref<1x16x32xf32, #tpu.memory_space<vmem>>, %arg9: memref<16x128xf32, #tpu.memory_space<vmem>>, %arg10: memref<2x32xf32, #tpu.memory_space<vmem>>, %arg11: memref<2x32xf32, #tpu.memory_space<vmem>>) attributes {dimension_semantics = [#tpu.dimension_semantics<parallel>, #tpu.dimension_semantics<arbitrary>], iteration_bounds = array<i64: 2, 1>, scalar_prefetch = 0 : i64, scratch_operands = 3 : i64, tpu.core_type = #tpu.core_type<tc>, window_params = [{transform_indices = @transform_0, window_bounds = array<i64: 1, 16, 32>}, {transform_indices = @transform_1, window_bounds = array<i64: 1, 1, 32, 128>}, {transform_indices = @transform_2, window_bounds = array<i64: 1, 32, 128>}, {transform_indices = @transform_3, window_bounds = array<i64: 1, 1, 128>}, {pipeline_mode = #tpu.pipeline_mode<synchronous>, transform_indices = @transform_4, window_bounds = array<i64: 1, 32>}, {pipeline_mode = #tpu.pipeline_mode<synchronous>, transform_indices = @transform_5, window_bounds = array<i64: 1, 32>}, {transform_indices = @transform_6, window_bounds = array<i64: 1, 16, 32>}]} {
    %c0 = arith.constant 0 : index
    %c0_0 = arith.constant 0 : index
    %c0_1 = arith.constant 0 : index
    %0 = vector.load %arg2[%c0, %c0_0, %c0_1] : memref<1x16x32xf32, #tpu.memory_space<vmem>>, vector<1x16x32xf32>
    %1 = vector.shape_cast %0 : vector<1x16x32xf32> to vector<16x32xf32>
    %cst = arith.constant dense<0.000000e+00> : vector<16xf32>
    %2 = vector.multi_reduction <add>, %1, %cst [1] : vector<16x32xf32> to vector<16xf32>
    %3 = vector.shape_cast %2 : vector<16xf32> to vector<16x1xf32>
    %cst_2 = arith.constant 3.200000e+01 : f32
    %4 = vector.broadcast %cst_2 : f32 to vector<16x1xf32>
    %5 = arith.divf %3, %4 : vector<16x1xf32>
    %6 = vector.broadcast %5 : vector<16x1xf32> to vector<16x32xf32>
    %7 = arith.subf %1, %6 : vector<16x32xf32>
    %8 = arith.mulf %7, %7 : vector<16x32xf32>
    %cst_3 = arith.constant dense<0.000000e+00> : vector<16xf32>
    %9 = vector.multi_reduction <add>, %8, %cst_3 [1] : vector<16x32xf32> to vector<16xf32>
    %10 = vector.shape_cast %9 : vector<16xf32> to vector<16x1xf32>
    %cst_4 = arith.constant 3.200000e+01 : f32
    %11 = vector.broadcast %cst_4 : f32 to vector<16x1xf32>
    %12 = arith.divf %10, %11 : vector<16x1xf32>
    %13 = vector.broadcast %5 : vector<16x1xf32> to vector<16x32xf32>
    %14 = arith.subf %1, %13 : vector<16x32xf32>
    %cst_5 = arith.constant 9.99999974E-6 : f32
    %15 = vector.broadcast %cst_5 : f32 to vector<16x1xf32>
    %16 = arith.addf %12, %15 : vector<16x1xf32>
    %17 = math.rsqrt %16 : vector<16x1xf32>
    %18 = vector.broadcast %17 : vector<16x1xf32> to vector<16x32xf32>
    %19 = arith.mulf %14, %18 : vector<16x32xf32>
    %c0_6 = arith.constant 0 : index
    %c0_7 = arith.constant 0 : index
    %20 = vector.load %arg6[%c0_6, %c0_7] : memref<1x32xf32, #tpu.memory_space<vmem>>, vector<1x32xf32>
    %21 = vector.broadcast %20 : vector<1x32xf32> to vector<16x32xf32>
    %22 = arith.mulf %19, %21 : vector<16x32xf32>
    %c0_8 = arith.constant 0 : index
    %c0_9 = arith.constant 0 : index
    %23 = vector.load %arg7[%c0_8, %c0_9] : memref<1x32xf32, #tpu.memory_space<vmem>>, vector<1x32xf32>
    %24 = vector.broadcast %23 : vector<1x32xf32> to vector<16x32xf32>
    %25 = arith.addf %22, %24 : vector<16x32xf32>
    %c0_10 = arith.constant 0 : index
    %c0_11 = arith.constant 0 : index
    %c0_12 = arith.constant 0 : index
    %c0_13 = arith.constant 0 : index
    %26 = vector.load %arg3[%c0_10, %c0_11, %c0_12, %c0_13] : memref<1x1x32x128xf32, #tpu.memory_space<vmem>>, vector<1x1x32x128xf32>
    %27 = vector.shape_cast %26 : vector<1x1x32x128xf32> to vector<32x128xf32>
    %cst_14 = arith.constant dense<0.000000e+00> : vector<16x128xf32>
    %28 = tpu.matmul %25, %27, %cst_14 {dimension_numbers = #tpu.dot_dimension_numbers<[1], [0], [0], [1], [0, 0, 1, 1], [], []>} : vector<16x32xf32>, vector<32x128xf32>, vector<16x128xf32> -> vector<16x128xf32>
    %c0_15 = arith.constant 0 : index
    %c0_16 = arith.constant 0 : index
    %c0_17 = arith.constant 0 : index
    %29 = vector.load %arg5[%c0_15, %c0_16, %c0_17] : memref<1x1x128xf32, #tpu.memory_space<vmem>>, vector<1x1x128xf32>
    %30 = vector.shape_cast %29 : vector<1x1x128xf32> to vector<1x128xf32>
    %31 = vector.broadcast %30 : vector<1x128xf32> to vector<16x128xf32>
    %32 = arith.addf %28, %31 : vector<16x128xf32>
    %c0_18 = arith.constant 0 : index
    %c0_19 = arith.constant 0 : index
    %33 = vector.load %arg9[%c0_18, %c0_19] : memref<16x128xf32, #tpu.memory_space<vmem>>, vector<16x128xf32>
    tpu.vector_store %arg9[%c0_18, %c0_19], %32 {strides = array<i32>} : memref<16x128xf32, #tpu.memory_space<vmem>>, vector<16x128xf32>,
    %c0_i32 = arith.constant 0 : i32
    %34 = arith.cmpi eq, %arg1, %c0_i32 : i32
    %35 = arith.extui %34 : i1 to i32
    %c0_i32_20 = arith.constant 0 : i32
    %36 = arith.cmpi ne, %35, %c0_i32_20 : i32
    scf.if %36 {
      %cst_169 = arith.constant 0.000000e+00 : f32
      %383 = vector.broadcast %cst_169 : f32 to vector<2x32xf32>
      %c0_170 = arith.constant 0 : index
      %c0_171 = arith.constant 0 : index
      %384 = vector.load %arg10[%c0_170, %c0_171] : memref<2x32xf32, #tpu.memory_space<vmem>>, vector<2x32xf32>
      tpu.vector_store %arg10[%c0_170, %c0_171], %383 {strides = array<i32>} : memref<2x32xf32, #tpu.memory_space<vmem>>, vector<2x32xf32>,
      %cst_172 = arith.constant 0.000000e+00 : f32
      %385 = vector.broadcast %cst_172 : f32 to vector<2x32xf32>
      %c0_173 = arith.constant 0 : index
      %c0_174 = arith.constant 0 : index
      %386 = vector.load %arg11[%c0_173, %c0_174] : memref<2x32xf32, #tpu.memory_space<vmem>>, vector<2x32xf32>
      tpu.vector_store %arg11[%c0_173, %c0_174], %385 {strides = array<i32>} : memref<2x32xf32, #tpu.memory_space<vmem>>, vector<2x32xf32>,
    } else {
    }
    %c0_21 = arith.constant 0 : index
    %c0_22 = arith.constant 0 : index
    %c0_23 = arith.constant 0 : index
    %37 = vector.load %arg4[%c0_21, %c0_22, %c0_23] : memref<1x32x128xf32, #tpu.memory_space<vmem>>, vector<1x32x128xf32>
    %38 = vector.shape_cast %37 : vector<1x32x128xf32> to vector<32x128xf32>
    %c0_i32_24 = arith.constant 0 : i32
    %c2_i32 = arith.constant 2 : i32
    %39 = arith.muli %c2_i32, %c0_i32_24 : i32
    %c7_i32 = arith.constant 7 : i32
    %40 = arith.subi %c7_i32, %39 : i32
    %41 = arith.muli %arg0, %40 : i32
    %42 = arith.addi %c0_i32_24, %41 : i32
    %c2_i32_25 = arith.constant 2 : i32
    %43 = arith.muli %42, %c2_i32_25 : i32
    %44 = tpu.assume_multiple %43, 2 : i32
    %c0_26 = arith.constant 0 : index
    %c0_27 = arith.constant 0 : index
    %45 = vector.load %arg10[%c0_26, %c0_27] : memref<2x32xf32, #tpu.memory_space<vmem>>, vector<2x32xf32>
    %c0_28 = arith.constant 0 : index
    %c0_29 = arith.constant 0 : index
    %46 = vector.load %arg11[%c0_28, %c0_29] : memref<2x32xf32, #tpu.memory_space<vmem>>, vector<2x32xf32>
    %47 = arith.index_cast %44 : i32 to index
    %c0_30 = arith.constant 0 : index
    %48 = vector.load %arg9[%47, %c0_30] : memref<16x128xf32, #tpu.memory_space<vmem>>, vector<2x128xf32>
    %cst_31 = arith.constant dense<0.000000e+00> : vector<2x128xf32>
    %49 = tpu.matmul %45, %38, %cst_31 {dimension_numbers = #tpu.dot_dimension_numbers<[1], [0], [0], [1], [0, 0, 1, 1], [], []>} : vector<2x32xf32>, vector<32x128xf32>, vector<2x128xf32> -> vector<2x128xf32>
    %50 = arith.addf %48, %49 : vector<2x128xf32>
    %51 = vector.extract_strided_slice %50 {offsets = [0, 0], sizes = [2, 32], strides = [1, 1]} : vector<2x128xf32> to vector<2x32xf32>
    %52 = arith.negf %51 : vector<2x32xf32>
    %53 = math.exp %52 : vector<2x32xf32>
    %cst_32 = arith.constant 1.000000e+00 : f32
    %54 = vector.broadcast %cst_32 : f32 to vector<2x32xf32>
    %55 = arith.addf %54, %53 : vector<2x32xf32>
    %56 = arith.divf %54, %55 : vector<2x32xf32>
    %57 = vector.extract_strided_slice %50 {offsets = [0, 32], sizes = [2, 32], strides = [1, 1]} : vector<2x128xf32> to vector<2x32xf32>
    %58 = arith.negf %57 : vector<2x32xf32>
    %59 = math.exp %58 : vector<2x32xf32>
    %cst_33 = arith.constant 1.000000e+00 : f32
    %60 = vector.broadcast %cst_33 : f32 to vector<2x32xf32>
    %61 = arith.addf %60, %59 : vector<2x32xf32>
    %62 = arith.divf %60, %61 : vector<2x32xf32>
    %63 = vector.extract_strided_slice %50 {offsets = [0, 64], sizes = [2, 32], strides = [1, 1]} : vector<2x128xf32> to vector<2x32xf32>
    %64 = math.tanh %63 : vector<2x32xf32>
    %65 = vector.extract_strided_slice %50 {offsets = [0, 96], sizes = [2, 32], strides = [1, 1]} : vector<2x128xf32> to vector<2x32xf32>
    %66 = arith.negf %65 : vector<2x32xf32>
    %67 = math.exp %66 : vector<2x32xf32>
    %cst_34 = arith.constant 1.000000e+00 : f32
    %68 = vector.broadcast %cst_34 : f32 to vector<2x32xf32>
    %69 = arith.addf %68, %67 : vector<2x32xf32>
    %70 = arith.divf %68, %69 : vector<2x32xf32>
    %71 = arith.mulf %62, %46 : vector<2x32xf32>
    %72 = arith.mulf %56, %64 : vector<2x32xf32>
    %73 = arith.addf %71, %72 : vector<2x32xf32>
    %74 = math.tanh %73 : vector<2x32xf32>
    %75 = arith.mulf %70, %74 : vector<2x32xf32>
    %c0_35 = arith.constant 0 : index
    %c0_36 = arith.constant 0 : index
    %76 = vector.load %arg11[%c0_35, %c0_36] : memref<2x32xf32, #tpu.memory_space<vmem>>, vector<2x32xf32>
    tpu.vector_store %arg11[%c0_35, %c0_36], %73 {strides = array<i32>} : memref<2x32xf32, #tpu.memory_space<vmem>>, vector<2x32xf32>,
    %c0_37 = arith.constant 0 : index
    %c0_38 = arith.constant 0 : index
    %77 = vector.load %arg10[%c0_37, %c0_38] : memref<2x32xf32, #tpu.memory_space<vmem>>, vector<2x32xf32>
    tpu.vector_store %arg10[%c0_37, %c0_38], %75 {strides = array<i32>} : memref<2x32xf32, #tpu.memory_space<vmem>>, vector<2x32xf32>,
    %c0_39 = arith.constant 0 : index
    %78 = arith.index_cast %44 : i32 to index
    %c0_40 = arith.constant 0 : index
    %79 = vector.load %arg8[%c0_39, %78, %c0_40] : memref<1x16x32xf32, #tpu.memory_space<vmem>>, vector<1x2x32xf32>
    %80 = vector.shape_cast %79 : vector<1x2x32xf32> to vector<2x32xf32>
    %81 = vector.shape_cast %75 : vector<2x32xf32> to vector<1x2x32xf32>
    tpu.vector_store %arg8[%c0_39, %78, %c0_40], %81 {strides = array<i32>} : memref<1x16x32xf32, #tpu.memory_space<vmem>>, vector<1x2x32xf32>,
    %c1_i32 = arith.constant 1 : i32
    %c2_i32_41 = arith.constant 2 : i32
    %82 = arith.muli %c2_i32_41, %c1_i32 : i32
    %c7_i32_42 = arith.constant 7 : i32
    %83 = arith.subi %c7_i32_42, %82 : i32
    %84 = arith.muli %arg0, %83 : i32
    %85 = arith.addi %c1_i32, %84 : i32
    %c2_i32_43 = arith.constant 2 : i32
    %86 = arith.muli %85, %c2_i32_43 : i32
    %87 = tpu.assume_multiple %86, 2 : i32
    %c0_44 = arith.constant 0 : index
    %c0_45 = arith.constant 0 : index
    %88 = vector.load %arg10[%c0_44, %c0_45] : memref<2x32xf32, #tpu.memory_space<vmem>>, vector<2x32xf32>
    %c0_46 = arith.constant 0 : index
    %c0_47 = arith.constant 0 : index
    %89 = vector.load %arg11[%c0_46, %c0_47] : memref<2x32xf32, #tpu.memory_space<vmem>>, vector<2x32xf32>
    %90 = arith.index_cast %87 : i32 to index
    %c0_48 = arith.constant 0 : index
    %91 = vector.load %arg9[%90, %c0_48] : memref<16x128xf32, #tpu.memory_space<vmem>>, vector<2x128xf32>
    %cst_49 = arith.constant dense<0.000000e+00> : vector<2x128xf32>
    %92 = tpu.matmul %88, %38, %cst_49 {dimension_numbers = #tpu.dot_dimension_numbers<[1], [0], [0], [1], [0, 0, 1, 1], [], []>} : vector<2x32xf32>, vector<32x128xf32>, vector<2x128xf32> -> vector<2x128xf32>
    %93 = arith.addf %91, %92 : vector<2x128xf32>
    %94 = vector.extract_strided_slice %93 {offsets = [0, 0], sizes = [2, 32], strides = [1, 1]} : vector<2x128xf32> to vector<2x32xf32>
    %95 = arith.negf %94 : vector<2x32xf32>
    %96 = math.exp %95 : vector<2x32xf32>
    %cst_50 = arith.constant 1.000000e+00 : f32
    %97 = vector.broadcast %cst_50 : f32 to vector<2x32xf32>
    %98 = arith.addf %97, %96 : vector<2x32xf32>
    %99 = arith.divf %97, %98 : vector<2x32xf32>
    %100 = vector.extract_strided_slice %93 {offsets = [0, 32], sizes = [2, 32], strides = [1, 1]} : vector<2x128xf32> to vector<2x32xf32>
    %101 = arith.negf %100 : vector<2x32xf32>
    %102 = math.exp %101 : vector<2x32xf32>
    %cst_51 = arith.constant 1.000000e+00 : f32
    %103 = vector.broadcast %cst_51 : f32 to vector<2x32xf32>
    %104 = arith.addf %103, %102 : vector<2x32xf32>
    %105 = arith.divf %103, %104 : vector<2x32xf32>
    %106 = vector.extract_strided_slice %93 {offsets = [0, 64], sizes = [2, 32], strides = [1, 1]} : vector<2x128xf32> to vector<2x32xf32>
    %107 = math.tanh %106 : vector<2x32xf32>
    %108 = vector.extract_strided_slice %93 {offsets = [0, 96], sizes = [2, 32], strides = [1, 1]} : vector<2x128xf32> to vector<2x32xf32>
    %109 = arith.negf %108 : vector<2x32xf32>
    %110 = math.exp %109 : vector<2x32xf32>
    %cst_52 = arith.constant 1.000000e+00 : f32
    %111 = vector.broadcast %cst_52 : f32 to vector<2x32xf32>
    %112 = arith.addf %111, %110 : vector<2x32xf32>
    %113 = arith.divf %111, %112 : vector<2x32xf32>
    %114 = arith.mulf %105, %89 : vector<2x32xf32>
    %115 = arith.mulf %99, %107 : vector<2x32xf32>
    %116 = arith.addf %114, %115 : vector<2x32xf32>
    %117 = math.tanh %116 : vector<2x32xf32>
    %118 = arith.mulf %113, %117 : vector<2x32xf32>
    %c0_53 = arith.constant 0 : index
    %c0_54 = arith.constant 0 : index
    %119 = vector.load %arg11[%c0_53, %c0_54] : memref<2x32xf32, #tpu.memory_space<vmem>>, vector<2x32xf32>
    tpu.vector_store %arg11[%c0_53, %c0_54], %116 {strides = array<i32>} : memref<2x32xf32, #tpu.memory_space<vmem>>, vector<2x32xf32>,
    %c0_55 = arith.constant 0 : index
    %c0_56 = arith.constant 0 : index
    %120 = vector.load %arg10[%c0_55, %c0_56] : memref<2x32xf32, #tpu.memory_space<vmem>>, vector<2x32xf32>
    tpu.vector_store %arg10[%c0_55, %c0_56], %118 {strides = array<i32>} : memref<2x32xf32, #tpu.memory_space<vmem>>, vector<2x32xf32>,
    %c0_57 = arith.constant 0 : index
    %121 = arith.index_cast %87 : i32 to index
    %c0_58 = arith.constant 0 : index
    %122 = vector.load %arg8[%c0_57, %121, %c0_58] : memref<1x16x32xf32, #tpu.memory_space<vmem>>, vector<1x2x32xf32>
    %123 = vector.shape_cast %122 : vector<1x2x32xf32> to vector<2x32xf32>
    %124 = vector.shape_cast %118 : vector<2x32xf32> to vector<1x2x32xf32>
    tpu.vector_store %arg8[%c0_57, %121, %c0_58], %124 {strides = array<i32>} : memref<1x16x32xf32, #tpu.memory_space<vmem>>, vector<1x2x32xf32>,
    %c2_i32_59 = arith.constant 2 : i32
    %c2_i32_60 = arith.constant 2 : i32
    %125 = arith.muli %c2_i32_60, %c2_i32_59 : i32
    %c7_i32_61 = arith.constant 7 : i32
    %126 = arith.subi %c7_i32_61, %125 : i32
    %127 = arith.muli %arg0, %126 : i32
    %128 = arith.addi %c2_i32_59, %127 : i32
    %c2_i32_62 = arith.constant 2 : i32
    %129 = arith.muli %128, %c2_i32_62 : i32
    %130 = tpu.assume_multiple %129, 2 : i32
    %c0_63 = arith.constant 0 : index
    %c0_64 = arith.constant 0 : index
    %131 = vector.load %arg10[%c0_63, %c0_64] : memref<2x32xf32, #tpu.memory_space<vmem>>, vector<2x32xf32>
    %c0_65 = arith.constant 0 : index
    %c0_66 = arith.constant 0 : index
    %132 = vector.load %arg11[%c0_65, %c0_66] : memref<2x32xf32, #tpu.memory_space<vmem>>, vector<2x32xf32>
    %133 = arith.index_cast %130 : i32 to index
    %c0_67 = arith.constant 0 : index
    %134 = vector.load %arg9[%133, %c0_67] : memref<16x128xf32, #tpu.memory_space<vmem>>, vector<2x128xf32>
    %cst_68 = arith.constant dense<0.000000e+00> : vector<2x128xf32>
    %135 = tpu.matmul %131, %38, %cst_68 {dimension_numbers = #tpu.dot_dimension_numbers<[1], [0], [0], [1], [0, 0, 1, 1], [], []>} : vector<2x32xf32>, vector<32x128xf32>, vector<2x128xf32> -> vector<2x128xf32>
    %136 = arith.addf %134, %135 : vector<2x128xf32>
    %137 = vector.extract_strided_slice %136 {offsets = [0, 0], sizes = [2, 32], strides = [1, 1]} : vector<2x128xf32> to vector<2x32xf32>
    %138 = arith.negf %137 : vector<2x32xf32>
    %139 = math.exp %138 : vector<2x32xf32>
    %cst_69 = arith.constant 1.000000e+00 : f32
    %140 = vector.broadcast %cst_69 : f32 to vector<2x32xf32>
    %141 = arith.addf %140, %139 : vector<2x32xf32>
    %142 = arith.divf %140, %141 : vector<2x32xf32>
    %143 = vector.extract_strided_slice %136 {offsets = [0, 32], sizes = [2, 32], strides = [1, 1]} : vector<2x128xf32> to vector<2x32xf32>
    %144 = arith.negf %143 : vector<2x32xf32>
    %145 = math.exp %144 : vector<2x32xf32>
    %cst_70 = arith.constant 1.000000e+00 : f32
    %146 = vector.broadcast %cst_70 : f32 to vector<2x32xf32>
    %147 = arith.addf %146, %145 : vector<2x32xf32>
    %148 = arith.divf %146, %147 : vector<2x32xf32>
    %149 = vector.extract_strided_slice %136 {offsets = [0, 64], sizes = [2, 32], strides = [1, 1]} : vector<2x128xf32> to vector<2x32xf32>
    %150 = math.tanh %149 : vector<2x32xf32>
    %151 = vector.extract_strided_slice %136 {offsets = [0, 96], sizes = [2, 32], strides = [1, 1]} : vector<2x128xf32> to vector<2x32xf32>
    %152 = arith.negf %151 : vector<2x32xf32>
    %153 = math.exp %152 : vector<2x32xf32>
    %cst_71 = arith.constant 1.000000e+00 : f32
    %154 = vector.broadcast %cst_71 : f32 to vector<2x32xf32>
    %155 = arith.addf %154, %153 : vector<2x32xf32>
    %156 = arith.divf %154, %155 : vector<2x32xf32>
    %157 = arith.mulf %148, %132 : vector<2x32xf32>
    %158 = arith.mulf %142, %150 : vector<2x32xf32>
    %159 = arith.addf %157, %158 : vector<2x32xf32>
    %160 = math.tanh %159 : vector<2x32xf32>
    %161 = arith.mulf %156, %160 : vector<2x32xf32>
    %c0_72 = arith.constant 0 : index
    %c0_73 = arith.constant 0 : index
    %162 = vector.load %arg11[%c0_72, %c0_73] : memref<2x32xf32, #tpu.memory_space<vmem>>, vector<2x32xf32>
    tpu.vector_store %arg11[%c0_72, %c0_73], %159 {strides = array<i32>} : memref<2x32xf32, #tpu.memory_space<vmem>>, vector<2x32xf32>,
    %c0_74 = arith.constant 0 : index
    %c0_75 = arith.constant 0 : index
    %163 = vector.load %arg10[%c0_74, %c0_75] : memref<2x32xf32, #tpu.memory_space<vmem>>, vector<2x32xf32>
    tpu.vector_store %arg10[%c0_74, %c0_75], %161 {strides = array<i32>} : memref<2x32xf32, #tpu.memory_space<vmem>>, vector<2x32xf32>,
    %c0_76 = arith.constant 0 : index
    %164 = arith.index_cast %130 : i32 to index
    %c0_77 = arith.constant 0 : index
    %165 = vector.load %arg8[%c0_76, %164, %c0_77] : memref<1x16x32xf32, #tpu.memory_space<vmem>>, vector<1x2x32xf32>
    %166 = vector.shape_cast %165 : vector<1x2x32xf32> to vector<2x32xf32>
    %167 = vector.shape_cast %161 : vector<2x32xf32> to vector<1x2x32xf32>
    tpu.vector_store %arg8[%c0_76, %164, %c0_77], %167 {strides = array<i32>} : memref<1x16x32xf32, #tpu.memory_space<vmem>>, vector<1x2x32xf32>,
    %c3_i32 = arith.constant 3 : i32
    %c2_i32_78 = arith.constant 2 : i32
    %168 = arith.muli %c2_i32_78, %c3_i32 : i32
    %c7_i32_79 = arith.constant 7 : i32
    %169 = arith.subi %c7_i32_79, %168 : i32
    %170 = arith.muli %arg0, %169 : i32
    %171 = arith.addi %c3_i32, %170 : i32
    %c2_i32_80 = arith.constant 2 : i32
    %172 = arith.muli %171, %c2_i32_80 : i32
    %173 = tpu.assume_multiple %172, 2 : i32
    %c0_81 = arith.constant 0 : index
    %c0_82 = arith.constant 0 : index
    %174 = vector.load %arg10[%c0_81, %c0_82] : memref<2x32xf32, #tpu.memory_space<vmem>>, vector<2x32xf32>
    %c0_83 = arith.constant 0 : index
    %c0_84 = arith.constant 0 : index
    %175 = vector.load %arg11[%c0_83, %c0_84] : memref<2x32xf32, #tpu.memory_space<vmem>>, vector<2x32xf32>
    %176 = arith.index_cast %173 : i32 to index
    %c0_85 = arith.constant 0 : index
    %177 = vector.load %arg9[%176, %c0_85] : memref<16x128xf32, #tpu.memory_space<vmem>>, vector<2x128xf32>
    %cst_86 = arith.constant dense<0.000000e+00> : vector<2x128xf32>
    %178 = tpu.matmul %174, %38, %cst_86 {dimension_numbers = #tpu.dot_dimension_numbers<[1], [0], [0], [1], [0, 0, 1, 1], [], []>} : vector<2x32xf32>, vector<32x128xf32>, vector<2x128xf32> -> vector<2x128xf32>
    %179 = arith.addf %177, %178 : vector<2x128xf32>
    %180 = vector.extract_strided_slice %179 {offsets = [0, 0], sizes = [2, 32], strides = [1, 1]} : vector<2x128xf32> to vector<2x32xf32>
    %181 = arith.negf %180 : vector<2x32xf32>
    %182 = math.exp %181 : vector<2x32xf32>
    %cst_87 = arith.constant 1.000000e+00 : f32
    %183 = vector.broadcast %cst_87 : f32 to vector<2x32xf32>
    %184 = arith.addf %183, %182 : vector<2x32xf32>
    %185 = arith.divf %183, %184 : vector<2x32xf32>
    %186 = vector.extract_strided_slice %179 {offsets = [0, 32], sizes = [2, 32], strides = [1, 1]} : vector<2x128xf32> to vector<2x32xf32>
    %187 = arith.negf %186 : vector<2x32xf32>
    %188 = math.exp %187 : vector<2x32xf32>
    %cst_88 = arith.constant 1.000000e+00 : f32
    %189 = vector.broadcast %cst_88 : f32 to vector<2x32xf32>
    %190 = arith.addf %189, %188 : vector<2x32xf32>
    %191 = arith.divf %189, %190 : vector<2x32xf32>
    %192 = vector.extract_strided_slice %179 {offsets = [0, 64], sizes = [2, 32], strides = [1, 1]} : vector<2x128xf32> to vector<2x32xf32>
    %193 = math.tanh %192 : vector<2x32xf32>
    %194 = vector.extract_strided_slice %179 {offsets = [0, 96], sizes = [2, 32], strides = [1, 1]} : vector<2x128xf32> to vector<2x32xf32>
    %195 = arith.negf %194 : vector<2x32xf32>
    %196 = math.exp %195 : vector<2x32xf32>
    %cst_89 = arith.constant 1.000000e+00 : f32
    %197 = vector.broadcast %cst_89 : f32 to vector<2x32xf32>
    %198 = arith.addf %197, %196 : vector<2x32xf32>
    %199 = arith.divf %197, %198 : vector<2x32xf32>
    %200 = arith.mulf %191, %175 : vector<2x32xf32>
    %201 = arith.mulf %185, %193 : vector<2x32xf32>
    %202 = arith.addf %200, %201 : vector<2x32xf32>
    %203 = math.tanh %202 : vector<2x32xf32>
    %204 = arith.mulf %199, %203 : vector<2x32xf32>
    %c0_90 = arith.constant 0 : index
    %c0_91 = arith.constant 0 : index
    %205 = vector.load %arg11[%c0_90, %c0_91] : memref<2x32xf32, #tpu.memory_space<vmem>>, vector<2x32xf32>
    tpu.vector_store %arg11[%c0_90, %c0_91], %202 {strides = array<i32>} : memref<2x32xf32, #tpu.memory_space<vmem>>, vector<2x32xf32>,
    %c0_92 = arith.constant 0 : index
    %c0_93 = arith.constant 0 : index
    %206 = vector.load %arg10[%c0_92, %c0_93] : memref<2x32xf32, #tpu.memory_space<vmem>>, vector<2x32xf32>
    tpu.vector_store %arg10[%c0_92, %c0_93], %204 {strides = array<i32>} : memref<2x32xf32, #tpu.memory_space<vmem>>, vector<2x32xf32>,
    %c0_94 = arith.constant 0 : index
    %207 = arith.index_cast %173 : i32 to index
    %c0_95 = arith.constant 0 : index
    %208 = vector.load %arg8[%c0_94, %207, %c0_95] : memref<1x16x32xf32, #tpu.memory_space<vmem>>, vector<1x2x32xf32>
    %209 = vector.shape_cast %208 : vector<1x2x32xf32> to vector<2x32xf32>
    %210 = vector.shape_cast %204 : vector<2x32xf32> to vector<1x2x32xf32>
    tpu.vector_store %arg8[%c0_94, %207, %c0_95], %210 {strides = array<i32>} : memref<1x16x32xf32, #tpu.memory_space<vmem>>, vector<1x2x32xf32>,
    %c4_i32 = arith.constant 4 : i32
    %c2_i32_96 = arith.constant 2 : i32
    %211 = arith.muli %c2_i32_96, %c4_i32 : i32
    %c7_i32_97 = arith.constant 7 : i32
    %212 = arith.subi %c7_i32_97, %211 : i32
    %213 = arith.muli %arg0, %212 : i32
    %214 = arith.addi %c4_i32, %213 : i32
    %c2_i32_98 = arith.constant 2 : i32
    %215 = arith.muli %214, %c2_i32_98 : i32
    %216 = tpu.assume_multiple %215, 2 : i32
    %c0_99 = arith.constant 0 : index
    %c0_100 = arith.constant 0 : index
    %217 = vector.load %arg10[%c0_99, %c0_100] : memref<2x32xf32, #tpu.memory_space<vmem>>, vector<2x32xf32>
    %c0_101 = arith.constant 0 : index
    %c0_102 = arith.constant 0 : index
    %218 = vector.load %arg11[%c0_101, %c0_102] : memref<2x32xf32, #tpu.memory_space<vmem>>, vector<2x32xf32>
    %219 = arith.index_cast %216 : i32 to index
    %c0_103 = arith.constant 0 : index
    %220 = vector.load %arg9[%219, %c0_103] : memref<16x128xf32, #tpu.memory_space<vmem>>, vector<2x128xf32>
    %cst_104 = arith.constant dense<0.000000e+00> : vector<2x128xf32>
    %221 = tpu.matmul %217, %38, %cst_104 {dimension_numbers = #tpu.dot_dimension_numbers<[1], [0], [0], [1], [0, 0, 1, 1], [], []>} : vector<2x32xf32>, vector<32x128xf32>, vector<2x128xf32> -> vector<2x128xf32>
    %222 = arith.addf %220, %221 : vector<2x128xf32>
    %223 = vector.extract_strided_slice %222 {offsets = [0, 0], sizes = [2, 32], strides = [1, 1]} : vector<2x128xf32> to vector<2x32xf32>
    %224 = arith.negf %223 : vector<2x32xf32>
    %225 = math.exp %224 : vector<2x32xf32>
    %cst_105 = arith.constant 1.000000e+00 : f32
    %226 = vector.broadcast %cst_105 : f32 to vector<2x32xf32>
    %227 = arith.addf %226, %225 : vector<2x32xf32>
    %228 = arith.divf %226, %227 : vector<2x32xf32>
    %229 = vector.extract_strided_slice %222 {offsets = [0, 32], sizes = [2, 32], strides = [1, 1]} : vector<2x128xf32> to vector<2x32xf32>
    %230 = arith.negf %229 : vector<2x32xf32>
    %231 = math.exp %230 : vector<2x32xf32>
    %cst_106 = arith.constant 1.000000e+00 : f32
    %232 = vector.broadcast %cst_106 : f32 to vector<2x32xf32>
    %233 = arith.addf %232, %231 : vector<2x32xf32>
    %234 = arith.divf %232, %233 : vector<2x32xf32>
    %235 = vector.extract_strided_slice %222 {offsets = [0, 64], sizes = [2, 32], strides = [1, 1]} : vector<2x128xf32> to vector<2x32xf32>
    %236 = math.tanh %235 : vector<2x32xf32>
    %237 = vector.extract_strided_slice %222 {offsets = [0, 96], sizes = [2, 32], strides = [1, 1]} : vector<2x128xf32> to vector<2x32xf32>
    %238 = arith.negf %237 : vector<2x32xf32>
    %239 = math.exp %238 : vector<2x32xf32>
    %cst_107 = arith.constant 1.000000e+00 : f32
    %240 = vector.broadcast %cst_107 : f32 to vector<2x32xf32>
    %241 = arith.addf %240, %239 : vector<2x32xf32>
    %242 = arith.divf %240, %241 : vector<2x32xf32>
    %243 = arith.mulf %234, %218 : vector<2x32xf32>
    %244 = arith.mulf %228, %236 : vector<2x32xf32>
    %245 = arith.addf %243, %244 : vector<2x32xf32>
    %246 = math.tanh %245 : vector<2x32xf32>
    %247 = arith.mulf %242, %246 : vector<2x32xf32>
    %c0_108 = arith.constant 0 : index
    %c0_109 = arith.constant 0 : index
    %248 = vector.load %arg11[%c0_108, %c0_109] : memref<2x32xf32, #tpu.memory_space<vmem>>, vector<2x32xf32>
    tpu.vector_store %arg11[%c0_108, %c0_109], %245 {strides = array<i32>} : memref<2x32xf32, #tpu.memory_space<vmem>>, vector<2x32xf32>,
    %c0_110 = arith.constant 0 : index
    %c0_111 = arith.constant 0 : index
    %249 = vector.load %arg10[%c0_110, %c0_111] : memref<2x32xf32, #tpu.memory_space<vmem>>, vector<2x32xf32>
    tpu.vector_store %arg10[%c0_110, %c0_111], %247 {strides = array<i32>} : memref<2x32xf32, #tpu.memory_space<vmem>>, vector<2x32xf32>,
    %c0_112 = arith.constant 0 : index
    %250 = arith.index_cast %216 : i32 to index
    %c0_113 = arith.constant 0 : index
    %251 = vector.load %arg8[%c0_112, %250, %c0_113] : memref<1x16x32xf32, #tpu.memory_space<vmem>>, vector<1x2x32xf32>
    %252 = vector.shape_cast %251 : vector<1x2x32xf32> to vector<2x32xf32>
    %253 = vector.shape_cast %247 : vector<2x32xf32> to vector<1x2x32xf32>
    tpu.vector_store %arg8[%c0_112, %250, %c0_113], %253 {strides = array<i32>} : memref<1x16x32xf32, #tpu.memory_space<vmem>>, vector<1x2x32xf32>,
    %c5_i32 = arith.constant 5 : i32
    %c2_i32_114 = arith.constant 2 : i32
    %254 = arith.muli %c2_i32_114, %c5_i32 : i32
    %c7_i32_115 = arith.constant 7 : i32
    %255 = arith.subi %c7_i32_115, %254 : i32
    %256 = arith.muli %arg0, %255 : i32
    %257 = arith.addi %c5_i32, %256 : i32
    %c2_i32_116 = arith.constant 2 : i32
    %258 = arith.muli %257, %c2_i32_116 : i32
    %259 = tpu.assume_multiple %258, 2 : i32
    %c0_117 = arith.constant 0 : index
    %c0_118 = arith.constant 0 : index
    %260 = vector.load %arg10[%c0_117, %c0_118] : memref<2x32xf32, #tpu.memory_space<vmem>>, vector<2x32xf32>
    %c0_119 = arith.constant 0 : index
    %c0_120 = arith.constant 0 : index
    %261 = vector.load %arg11[%c0_119, %c0_120] : memref<2x32xf32, #tpu.memory_space<vmem>>, vector<2x32xf32>
    %262 = arith.index_cast %259 : i32 to index
    %c0_121 = arith.constant 0 : index
    %263 = vector.load %arg9[%262, %c0_121] : memref<16x128xf32, #tpu.memory_space<vmem>>, vector<2x128xf32>
    %cst_122 = arith.constant dense<0.000000e+00> : vector<2x128xf32>
    %264 = tpu.matmul %260, %38, %cst_122 {dimension_numbers = #tpu.dot_dimension_numbers<[1], [0], [0], [1], [0, 0, 1, 1], [], []>} : vector<2x32xf32>, vector<32x128xf32>, vector<2x128xf32> -> vector<2x128xf32>
    %265 = arith.addf %263, %264 : vector<2x128xf32>
    %266 = vector.extract_strided_slice %265 {offsets = [0, 0], sizes = [2, 32], strides = [1, 1]} : vector<2x128xf32> to vector<2x32xf32>
    %267 = arith.negf %266 : vector<2x32xf32>
    %268 = math.exp %267 : vector<2x32xf32>
    %cst_123 = arith.constant 1.000000e+00 : f32
    %269 = vector.broadcast %cst_123 : f32 to vector<2x32xf32>
    %270 = arith.addf %269, %268 : vector<2x32xf32>
    %271 = arith.divf %269, %270 : vector<2x32xf32>
    %272 = vector.extract_strided_slice %265 {offsets = [0, 32], sizes = [2, 32], strides = [1, 1]} : vector<2x128xf32> to vector<2x32xf32>
    %273 = arith.negf %272 : vector<2x32xf32>
    %274 = math.exp %273 : vector<2x32xf32>
    %cst_124 = arith.constant 1.000000e+00 : f32
    %275 = vector.broadcast %cst_124 : f32 to vector<2x32xf32>
    %276 = arith.addf %275, %274 : vector<2x32xf32>
    %277 = arith.divf %275, %276 : vector<2x32xf32>
    %278 = vector.extract_strided_slice %265 {offsets = [0, 64], sizes = [2, 32], strides = [1, 1]} : vector<2x128xf32> to vector<2x32xf32>
    %279 = math.tanh %278 : vector<2x32xf32>
    %280 = vector.extract_strided_slice %265 {offsets = [0, 96], sizes = [2, 32], strides = [1, 1]} : vector<2x128xf32> to vector<2x32xf32>
    %281 = arith.negf %280 : vector<2x32xf32>
    %282 = math.exp %281 : vector<2x32xf32>
    %cst_125 = arith.constant 1.000000e+00 : f32
    %283 = vector.broadcast %cst_125 : f32 to vector<2x32xf32>
    %284 = arith.addf %283, %282 : vector<2x32xf32>
    %285 = arith.divf %283, %284 : vector<2x32xf32>
    %286 = arith.mulf %277, %261 : vector<2x32xf32>
    %287 = arith.mulf %271, %279 : vector<2x32xf32>
    %288 = arith.addf %286, %287 : vector<2x32xf32>
    %289 = math.tanh %288 : vector<2x32xf32>
    %290 = arith.mulf %285, %289 : vector<2x32xf32>
    %c0_126 = arith.constant 0 : index
    %c0_127 = arith.constant 0 : index
    %291 = vector.load %arg11[%c0_126, %c0_127] : memref<2x32xf32, #tpu.memory_space<vmem>>, vector<2x32xf32>
    tpu.vector_store %arg11[%c0_126, %c0_127], %288 {strides = array<i32>} : memref<2x32xf32, #tpu.memory_space<vmem>>, vector<2x32xf32>,
    %c0_128 = arith.constant 0 : index
    %c0_129 = arith.constant 0 : index
    %292 = vector.load %arg10[%c0_128, %c0_129] : memref<2x32xf32, #tpu.memory_space<vmem>>, vector<2x32xf32>
    tpu.vector_store %arg10[%c0_128, %c0_129], %290 {strides = array<i32>} : memref<2x32xf32, #tpu.memory_space<vmem>>, vector<2x32xf32>,
    %c0_130 = arith.constant 0 : index
    %293 = arith.index_cast %259 : i32 to index
    %c0_131 = arith.constant 0 : index
    %294 = vector.load %arg8[%c0_130, %293, %c0_131] : memref<1x16x32xf32, #tpu.memory_space<vmem>>, vector<1x2x32xf32>
    %295 = vector.shape_cast %294 : vector<1x2x32xf32> to vector<2x32xf32>
    %296 = vector.shape_cast %290 : vector<2x32xf32> to vector<1x2x32xf32>
    tpu.vector_store %arg8[%c0_130, %293, %c0_131], %296 {strides = array<i32>} : memref<1x16x32xf32, #tpu.memory_space<vmem>>, vector<1x2x32xf32>,
    %c6_i32 = arith.constant 6 : i32
    %c2_i32_132 = arith.constant 2 : i32
    %297 = arith.muli %c2_i32_132, %c6_i32 : i32
    %c7_i32_133 = arith.constant 7 : i32
    %298 = arith.subi %c7_i32_133, %297 : i32
    %299 = arith.muli %arg0, %298 : i32
    %300 = arith.addi %c6_i32, %299 : i32
    %c2_i32_134 = arith.constant 2 : i32
    %301 = arith.muli %300, %c2_i32_134 : i32
    %302 = tpu.assume_multiple %301, 2 : i32
    %c0_135 = arith.constant 0 : index
    %c0_136 = arith.constant 0 : index
    %303 = vector.load %arg10[%c0_135, %c0_136] : memref<2x32xf32, #tpu.memory_space<vmem>>, vector<2x32xf32>
    %c0_137 = arith.constant 0 : index
    %c0_138 = arith.constant 0 : index
    %304 = vector.load %arg11[%c0_137, %c0_138] : memref<2x32xf32, #tpu.memory_space<vmem>>, vector<2x32xf32>
    %305 = arith.index_cast %302 : i32 to index
    %c0_139 = arith.constant 0 : index
    %306 = vector.load %arg9[%305, %c0_139] : memref<16x128xf32, #tpu.memory_space<vmem>>, vector<2x128xf32>
    %cst_140 = arith.constant dense<0.000000e+00> : vector<2x128xf32>
    %307 = tpu.matmul %303, %38, %cst_140 {dimension_numbers = #tpu.dot_dimension_numbers<[1], [0], [0], [1], [0, 0, 1, 1], [], []>} : vector<2x32xf32>, vector<32x128xf32>, vector<2x128xf32> -> vector<2x128xf32>
    %308 = arith.addf %306, %307 : vector<2x128xf32>
    %309 = vector.extract_strided_slice %308 {offsets = [0, 0], sizes = [2, 32], strides = [1, 1]} : vector<2x128xf32> to vector<2x32xf32>
    %310 = arith.negf %309 : vector<2x32xf32>
    %311 = math.exp %310 : vector<2x32xf32>
    %cst_141 = arith.constant 1.000000e+00 : f32
    %312 = vector.broadcast %cst_141 : f32 to vector<2x32xf32>
    %313 = arith.addf %312, %311 : vector<2x32xf32>
    %314 = arith.divf %312, %313 : vector<2x32xf32>
    %315 = vector.extract_strided_slice %308 {offsets = [0, 32], sizes = [2, 32], strides = [1, 1]} : vector<2x128xf32> to vector<2x32xf32>
    %316 = arith.negf %315 : vector<2x32xf32>
    %317 = math.exp %316 : vector<2x32xf32>
    %cst_142 = arith.constant 1.000000e+00 : f32
    %318 = vector.broadcast %cst_142 : f32 to vector<2x32xf32>
    %319 = arith.addf %318, %317 : vector<2x32xf32>
    %320 = arith.divf %318, %319 : vector<2x32xf32>
    %321 = vector.extract_strided_slice %308 {offsets = [0, 64], sizes = [2, 32], strides = [1, 1]} : vector<2x128xf32> to vector<2x32xf32>
    %322 = math.tanh %321 : vector<2x32xf32>
    %323 = vector.extract_strided_slice %308 {offsets = [0, 96], sizes = [2, 32], strides = [1, 1]} : vector<2x128xf32> to vector<2x32xf32>
    %324 = arith.negf %323 : vector<2x32xf32>
    %325 = math.exp %324 : vector<2x32xf32>
    %cst_143 = arith.constant 1.000000e+00 : f32
    %326 = vector.broadcast %cst_143 : f32 to vector<2x32xf32>
    %327 = arith.addf %326, %325 : vector<2x32xf32>
    %328 = arith.divf %326, %327 : vector<2x32xf32>
    %329 = arith.mulf %320, %304 : vector<2x32xf32>
    %330 = arith.mulf %314, %322 : vector<2x32xf32>
    %331 = arith.addf %329, %330 : vector<2x32xf32>
    %332 = math.tanh %331 : vector<2x32xf32>
    %333 = arith.mulf %328, %332 : vector<2x32xf32>
    %c0_144 = arith.constant 0 : index
    %c0_145 = arith.constant 0 : index
    %334 = vector.load %arg11[%c0_144, %c0_145] : memref<2x32xf32, #tpu.memory_space<vmem>>, vector<2x32xf32>
    tpu.vector_store %arg11[%c0_144, %c0_145], %331 {strides = array<i32>} : memref<2x32xf32, #tpu.memory_space<vmem>>, vector<2x32xf32>,
    %c0_146 = arith.constant 0 : index
    %c0_147 = arith.constant 0 : index
    %335 = vector.load %arg10[%c0_146, %c0_147] : memref<2x32xf32, #tpu.memory_space<vmem>>, vector<2x32xf32>
    tpu.vector_store %arg10[%c0_146, %c0_147], %333 {strides = array<i32>} : memref<2x32xf32, #tpu.memory_space<vmem>>, vector<2x32xf32>,
    %c0_148 = arith.constant 0 : index
    %336 = arith.index_cast %302 : i32 to index
    %c0_149 = arith.constant 0 : index
    %337 = vector.load %arg8[%c0_148, %336, %c0_149] : memref<1x16x32xf32, #tpu.memory_space<vmem>>, vector<1x2x32xf32>
    %338 = vector.shape_cast %337 : vector<1x2x32xf32> to vector<2x32xf32>
    %339 = vector.shape_cast %333 : vector<2x32xf32> to vector<1x2x32xf32>
    tpu.vector_store %arg8[%c0_148, %336, %c0_149], %339 {strides = array<i32>} : memref<1x16x32xf32, #tpu.memory_space<vmem>>, vector<1x2x32xf32>,
    %c7_i32_150 = arith.constant 7 : i32
    %c2_i32_151 = arith.constant 2 : i32
    %340 = arith.muli %c2_i32_151, %c7_i32_150 : i32
    %c7_i32_152 = arith.constant 7 : i32
    %341 = arith.subi %c7_i32_152, %340 : i32
    %342 = arith.muli %arg0, %341 : i32
    %343 = arith.addi %c7_i32_150, %342 : i32
    %c2_i32_153 = arith.constant 2 : i32
    %344 = arith.muli %343, %c2_i32_153 : i32
    %345 = tpu.assume_multiple %344, 2 : i32
    %c0_154 = arith.constant 0 : index
    %c0_155 = arith.constant 0 : index
    %346 = vector.load %arg10[%c0_154, %c0_155] : memref<2x32xf32, #tpu.memory_space<vmem>>, vector<2x32xf32>
    %c0_156 = arith.constant 0 : index
    %c0_157 = arith.constant 0 : index
    %347 = vector.load %arg11[%c0_156, %c0_157] : memref<2x32xf32, #tpu.memory_space<vmem>>, vector<2x32xf32>
    %348 = arith.index_cast %345 : i32 to index
    %c0_158 = arith.constant 0 : index
    %349 = vector.load %arg9[%348, %c0_158] : memref<16x128xf32, #tpu.memory_space<vmem>>, vector<2x128xf32>
    %cst_159 = arith.constant dense<0.000000e+00> : vector<2x128xf32>
    %350 = tpu.matmul %346, %38, %cst_159 {dimension_numbers = #tpu.dot_dimension_numbers<[1], [0], [0], [1], [0, 0, 1, 1], [], []>} : vector<2x32xf32>, vector<32x128xf32>, vector<2x128xf32> -> vector<2x128xf32>
    %351 = arith.addf %349, %350 : vector<2x128xf32>
    %352 = vector.extract_strided_slice %351 {offsets = [0, 0], sizes = [2, 32], strides = [1, 1]} : vector<2x128xf32> to vector<2x32xf32>
    %353 = arith.negf %352 : vector<2x32xf32>
    %354 = math.exp %353 : vector<2x32xf32>
    %cst_160 = arith.constant 1.000000e+00 : f32
    %355 = vector.broadcast %cst_160 : f32 to vector<2x32xf32>
    %356 = arith.addf %355, %354 : vector<2x32xf32>
    %357 = arith.divf %355, %356 : vector<2x32xf32>
    %358 = vector.extract_strided_slice %351 {offsets = [0, 32], sizes = [2, 32], strides = [1, 1]} : vector<2x128xf32> to vector<2x32xf32>
    %359 = arith.negf %358 : vector<2x32xf32>
    %360 = math.exp %359 : vector<2x32xf32>
    %cst_161 = arith.constant 1.000000e+00 : f32
    %361 = vector.broadcast %cst_161 : f32 to vector<2x32xf32>
    %362 = arith.addf %361, %360 : vector<2x32xf32>
    %363 = arith.divf %361, %362 : vector<2x32xf32>
    %364 = vector.extract_strided_slice %351 {offsets = [0, 64], sizes = [2, 32], strides = [1, 1]} : vector<2x128xf32> to vector<2x32xf32>
    %365 = math.tanh %364 : vector<2x32xf32>
    %366 = vector.extract_strided_slice %351 {offsets = [0, 96], sizes = [2, 32], strides = [1, 1]} : vector<2x128xf32> to vector<2x32xf32>
    %367 = arith.negf %366 : vector<2x32xf32>
    %368 = math.exp %367 : vector<2x32xf32>
    %cst_162 = arith.constant 1.000000e+00 : f32
    %369 = vector.broadcast %cst_162 : f32 to vector<2x32xf32>
    %370 = arith.addf %369, %368 : vector<2x32xf32>
    %371 = arith.divf %369, %370 : vector<2x32xf32>
    %372 = arith.mulf %363, %347 : vector<2x32xf32>
    %373 = arith.mulf %357, %365 : vector<2x32xf32>
    %374 = arith.addf %372, %373 : vector<2x32xf32>
    %375 = math.tanh %374 : vector<2x32xf32>
    %376 = arith.mulf %371, %375 : vector<2x32xf32>
    %c0_163 = arith.constant 0 : index
    %c0_164 = arith.constant 0 : index
    %377 = vector.load %arg11[%c0_163, %c0_164] : memref<2x32xf32, #tpu.memory_space<vmem>>, vector<2x32xf32>
    tpu.vector_store %arg11[%c0_163, %c0_164], %374 {strides = array<i32>} : memref<2x32xf32, #tpu.memory_space<vmem>>, vector<2x32xf32>,
    %c0_165 = arith.constant 0 : index
    %c0_166 = arith.constant 0 : index
    %378 = vector.load %arg10[%c0_165, %c0_166] : memref<2x32xf32, #tpu.memory_space<vmem>>, vector<2x32xf32>
    tpu.vector_store %arg10[%c0_165, %c0_166], %376 {strides = array<i32>} : memref<2x32xf32, #tpu.memory_space<vmem>>, vector<2x32xf32>,
    %c0_167 = arith.constant 0 : index
    %379 = arith.index_cast %345 : i32 to index
    %c0_168 = arith.constant 0 : index
    %380 = vector.load %arg8[%c0_167, %379, %c0_168] : memref<1x16x32xf32, #tpu.memory_space<vmem>>, vector<1x2x32xf32>
    %381 = vector.shape_cast %380 : vector<1x2x32xf32> to vector<2x32xf32>
    %382 = vector.shape_cast %376 : vector<2x32xf32> to vector<1x2x32xf32>
    tpu.vector_store %arg8[%c0_167, %379, %c0_168], %382 {strides = array<i32>} : memref<1x16x32xf32, #tpu.memory_space<vmem>>, vector<1x2x32xf32>,
    %c8_i32 = arith.constant 8 : i32
    return
  }
  func.func @transform_0(%arg0: i32, %arg1: i32) -> (i32, i32, i32) {
    %c2_i32 = arith.constant 2 : i32
    %0 = arith.muli %c2_i32, %arg1 : i32
    %c0_i32 = arith.constant 0 : i32
    %1 = arith.subi %c0_i32, %0 : i32
    %2 = arith.muli %arg0, %1 : i32
    %3 = arith.addi %arg1, %2 : i32
    %c0_i32_0 = arith.constant 0 : i32
    %c0_i32_1 = arith.constant 0 : i32
    %c0_i32_2 = arith.constant 0 : i32
    return %c0_i32_0, %3, %c0_i32_1 : i32, i32, i32
  }
  func.func @transform_1(%arg0: i32, %arg1: i32) -> (i32, i32, i32, i32) {
    %c0_i32 = arith.constant 0 : i32
    %c0_i32_0 = arith.constant 0 : i32
    %c0_i32_1 = arith.constant 0 : i32
    %c0_i32_2 = arith.constant 0 : i32
    return %arg0, %c0_i32, %c0_i32_0, %c0_i32_1 : i32, i32, i32, i32
  }
  func.func @transform_2(%arg0: i32, %arg1: i32) -> (i32, i32, i32) {
    %c0_i32 = arith.constant 0 : i32
    %c0_i32_0 = arith.constant 0 : i32
    %c0_i32_1 = arith.constant 0 : i32
    return %arg0, %c0_i32, %c0_i32_0 : i32, i32, i32
  }
  func.func @transform_3(%arg0: i32, %arg1: i32) -> (i32, i32, i32) {
    %c0_i32 = arith.constant 0 : i32
    %c0_i32_0 = arith.constant 0 : i32
    %c0_i32_1 = arith.constant 0 : i32
    return %arg0, %c0_i32, %c0_i32_0 : i32, i32, i32
  }
  func.func @transform_4(%arg0: i32, %arg1: i32) -> (i32, i32) {
    %c0_i32 = arith.constant 0 : i32
    %c0_i32_0 = arith.constant 0 : i32
    %c0_i32_1 = arith.constant 0 : i32
    return %c0_i32, %c0_i32_0 : i32, i32
  }
  func.func @transform_5(%arg0: i32, %arg1: i32) -> (i32, i32) {
    %c0_i32 = arith.constant 0 : i32
    %c0_i32_0 = arith.constant 0 : i32
    %c0_i32_1 = arith.constant 0 : i32
    return %c0_i32, %c0_i32_0 : i32, i32
  }
  func.func @transform_6(%arg0: i32, %arg1: i32) -> (i32, i32, i32) {
    %c2_i32 = arith.constant 2 : i32
    %0 = arith.muli %c2_i32, %arg1 : i32
    %c0_i32 = arith.constant 0 : i32
    %1 = arith.subi %c0_i32, %0 : i32
    %2 = arith.muli %arg0, %1 : i32
    %3 = arith.addi %arg1, %2 : i32
    %c0_i32_0 = arith.constant 0 : i32
    %c0_i32_1 = arith.constant 0 : i32
    return %arg0, %3, %c0_i32_0 : i32, i32, i32
  }
}

</mosaic_0001>

<llo_original>
// kernel: tpu_custom_call.1
$region0: #{tpu_custom_call.1}
  #allocation0 [shape = 'u32[]', space=smem, size = 0x4, offset = 0x4, fixed_abs, tag = 'smem constant byte address 0x4 - core index']
  #allocation1 [shape = 'u32[144,128]{1,0:T(1,128)}', space=vmem, size = 0x12000, scoped, tag = 'internal scratch']
  #allocation2 [shape = 'f32[16,128]{1,0:T(8,128)}', space=vmem, size = 0x2000, scoped, tag = 'scratch operand']
  #allocation3 [shape = 'f32[2,32]{1,0:T(2,128)}', space=vmem, size = 0x400, scoped, tag = 'scratch operand']
  #allocation4 [shape = 'f32[2,32]{1,0:T(2,128)}', space=vmem, size = 0x400, scoped, tag = 'scratch operand']
  %s0 = inlined_call_operand.hbm [shape: f32[1,16,32], index: 0, kind: input, shape index: {}]
  %s1 = inlined_call_operand.hbm [shape: f32[2,1,32,128], index: 1, kind: input, shape index: {}]
  %s2 = inlined_call_operand.hbm [shape: f32[2,32,128], index: 2, kind: input, shape index: {}]
  %s3 = inlined_call_operand.vmem [shape: f32[2,1,128], index: 3, kind: input, shape index: {}]
  %s4 = inlined_call_operand.vmem [shape: f32[1,32], index: 4, kind: input, shape index: {}]
  %s5 = inlined_call_operand.vmem [shape: f32[1,32], index: 5, kind: input, shape index: {}]
  %s6 = inlined_call_operand.hbm [shape: f32[2,16,32], index: 6, kind: output, shape index: {}]
  %s7 = sld [smem:[#allocation0]]
  $region73: #{tpu_custom_call.1} parent=0
    _
  %s9 = ssub.s32 1, %s7
  %s10 = scalar_select 0, %s9, %s7
  $region1: #{tpu_custom_call.1} parent=0
    #allocation5 [shape = 'u8[16384]{0}', space=vmem, size = 0x4000, scoped, tag = 'input window, operand 0']
    #allocation6 [shape = 's32[2]{0}', space=sflag, size = 0x8, scoped, tag = 'scoped memory for tpu_custom_call.1']
    #allocation7 [shape = 's32[2]{0}', space=sflag, size = 0x8, scoped, tag = 'scoped memory for tpu_custom_call.1']
    #allocation8 [shape = 'u8[32768]{0}', space=vmem, size = 0x8000, scoped, tag = 'input window, operand 1']
    #allocation9 [shape = 's32[2]{0}', space=sflag, size = 0x8, scoped, tag = 'scoped memory for tpu_custom_call.1']
    #allocation10 [shape = 'u8[32768]{0}', space=vmem, size = 0x8000, scoped, tag = 'input window, operand 2']
    #allocation11 [shape = 'u8[16384]{0}', space=vmem, size = 0x4000, scoped, tag = 'output window, operand 0']
    %11 = vsyncpa [#allocation6], 0
    %s12 = scalar_lea.sflag [#allocation6], 1
    %13 = vsyncpa %s12, 0
    %14 = vsyncpa [#allocation9], 0
    %s15 = scalar_lea.sflag [#allocation9], 1
    %16 = vsyncpa %s15, 0
    %17 = vsyncpa [#allocation7], 0
    %s18 = scalar_lea.sflag [#allocation7], 1
    %19 = vsyncpa %s18, 0
    loop: start=0, step=1, limit=4
    $region2: #{tpu_custom_call.1} parent=1 // loop_pre_header
      _
    $region3: #{tpu_custom_call.1} parent=1 // loop_header
      %s21 = sphi 0, %s25
      %p22 = scmp.ge.s32.totalorder %s21, 4
      %s28 = sphi 0, %s40
      %s29 = sphi 0, %s36
      %s30 = sphi 0, %s28
      %s31 = sphi 0, %s29
      %s32 = sphi 0, %s30
      %s33 = sphi 0, %s31
      %s51 = sphi 0, %s53
      %s54 = sphi 0, %s51
      %s55 = sphi 0, %s54
      %s71 = sphi 0, %s55
      %s77 = sphi 0, %s79
      %s80 = sphi 0, %s77
      %s81 = sphi 0, %s80
      %s97 = sphi 0, %s81
      %s103 = sphi 0, %s105
      %s106 = sphi 0, %s103
      %s107 = sphi 0, %s106
      %s123 = sphi 0, %s107
      %s129 = sphi 0, %s131
      %s132 = sphi 0, %s129
      %s133 = sphi 0, %s132
      %s149 = sphi 0, %s133
      %s153 = sphi 0, %s153
      %s155 = sphi 0, %s153
      %s156 = sphi 0, %s155
      %s170 = sphi 0, %s156
      %s174 = sphi 0, %s174
      %s176 = sphi 0, %s174
      %s177 = sphi 0, %s176
      %s191 = sphi 0, %s177
      %s207 = sphi 0, %s209
      %s210 = sphi 0, %s207
      %s211 = sphi 0, %s210
      %s227 = sphi 0, %s211
    $region4: #{tpu_custom_call.1} parent=1 // loop_header_branch
      %24 = sbr.rel (%p22) target = $region8
    $region5: #{tpu_custom_call.1} parent=1 // loop_body
      %s26 = ssub.s32 %s21, 1
      %s27 = ssub.s32 %s21, 2
      %s34 = sadd.s32 1, %s29
      %p35 = scmp.ge.s32.totalorder %s34, 1
      %s36 = scalar_select %p35, 0, %s34
      %s37 = sadd.s32 1, %s28
      %s38 = scalar_select %p35, %s37, %s28
      %p39 = scmp.ge.s32.totalorder %s38, 2
      %s40 = scalar_select %p39, 0, %s38
      %s41 = smul.u32 %s29, 2
      %s42 = ssub.s32 0, %s41
      %s43 = smul.u32 %s28, %s42
      %s44 = sadd.s32 %s29, %s43
      %s45 = smul.u32 %s36, 2
      %s46 = ssub.s32 0, %s45
      %s47 = smul.u32 %s40, %s46
      %s48 = sadd.s32 %s36, %s47
      %s49 = ssub.s32 %s44, %s48
      %p50 = scmp.eq.s32.totalorder %s49, 0
      %s52 = sadd.s32 %s51, 1
      %s53 = scalar_select %p50, %s51, %s52
      %p56 = pneg %p50
      %p57 = scmp.eq.s32.totalorder %s21, 1
      %p58 = por %p56, %p57
      %p59 = scmp.ne.s32.totalorder %s51, %s54
      %p60 = scmp.eq.s32.totalorder %s21, 0
      %p61 = por %p59, %p60
      %p62 = scmp.ne.s32.totalorder %s51, %s54
      %p63 = scmp.eq.s32.totalorder %s26, 1
      %p64 = por %p62, %p63
      %p65 = scmp.ne.s32.totalorder %s54, %s55
      %p66 = scmp.eq.s32.totalorder %s26, 0
      %p67 = por %p65, %p66
      %p68 = scmp.ne.s32.totalorder %s54, %s55
      %p69 = scmp.eq.s32.totalorder %s27, 1
      %p70 = por %p68, %p69
      %p72 = scmp.ne.s32.totalorder %s55, %s71
      %p73 = scmp.eq.s32.totalorder %s27, 0
      %p74 = por %p72, %p73
      %s75 = ssub.s32 %s28, %s40
      %p76 = scmp.eq.s32.totalorder %s75, 0
      %s78 = sadd.s32 %s77, 1
      %s79 = scalar_select %p76, %s77, %s78
      %p82 = pneg %p76
      %p83 = scmp.eq.s32.totalorder %s21, 1
      %p84 = por %p82, %p83
      %p85 = scmp.ne.s32.totalorder %s77, %s80
      %p86 = scmp.eq.s32.totalorder %s21, 0
      %p87 = por %p85, %p86
      %p88 = scmp.ne.s32.totalorder %s77, %s80
      %p89 = scmp.eq.s32.totalorder %s26, 1
      %p90 = por %p88, %p89
      %p91 = scmp.ne.s32.totalorder %s80, %s81
      %p92 = scmp.eq.s32.totalorder %s26, 0
      %p93 = por %p91, %p92
      %p94 = scmp.ne.s32.totalorder %s80, %s81
      %p95 = scmp.eq.s32.totalorder %s27, 1
      %p96 = por %p94, %p95
      %p98 = scmp.ne.s32.totalorder %s81, %s97
      %p99 = scmp.eq.s32.totalorder %s27, 0
      %p100 = por %p98, %p99
      %s101 = ssub.s32 %s28, %s40
      %p102 = scmp.eq.s32.totalorder %s101, 0
      %s104 = sadd.s32 %s103, 1
      %s105 = scalar_select %p102, %s103, %s104
      %p108 = pneg %p102
      %p109 = scmp.eq.s32.totalorder %s21, 1
      %p110 = por %p108, %p109
      %p111 = scmp.ne.s32.totalorder %s103, %s106
      %p112 = scmp.eq.s32.totalorder %s21, 0
      %p113 = por %p111, %p112
      %p114 = scmp.ne.s32.totalorder %s103, %s106
      %p115 = scmp.eq.s32.totalorder %s26, 1
      %p116 = por %p114, %p115
      %p117 = scmp.ne.s32.totalorder %s106, %s107
      %p118 = scmp.eq.s32.totalorder %s26, 0
      %p119 = por %p117, %p118
      %p120 = scmp.ne.s32.totalorder %s106, %s107
      %p121 = scmp.eq.s32.totalorder %s27, 1
      %p122 = por %p120, %p121
      %p124 = scmp.ne.s32.totalorder %s107, %s123
      %p125 = scmp.eq.s32.totalorder %s27, 0
      %p126 = por %p124, %p125
      %s127 = ssub.s32 %s28, %s40
      %p128 = scmp.eq.s32.totalorder %s127, 0
      %s130 = sadd.s32 %s129, 1
      %s131 = scalar_select %p128, %s129, %s130
      %p134 = pneg %p128
      %p135 = scmp.eq.s32.totalorder %s21, 1
      %p136 = por %p134, %p135
      %p137 = scmp.ne.s32.totalorder %s129, %s132
      %p138 = scmp.eq.s32.totalorder %s21, 0
      %p139 = por %p137, %p138
      %p140 = scmp.ne.s32.totalorder %s129, %s132
      %p141 = scmp.eq.s32.totalorder %s26, 1
      %p142 = por %p140, %p141
      %p143 = scmp.ne.s32.totalorder %s132, %s133
      %p144 = scmp.eq.s32.totalorder %s26, 0
      %p145 = por %p143, %p144
      %p146 = scmp.ne.s32.totalorder %s132, %s133
      %p147 = scmp.eq.s32.totalorder %s27, 1
      %p148 = por %p146, %p147
      %p150 = scmp.ne.s32.totalorder %s133, %s149
      %p151 = scmp.eq.s32.totalorder %s27, 0
      %p152 = por %p150, %p151
      %s154 = sadd.s32 %s153, 1
      %p157 = scmp.eq.s32.totalorder %s21, 1
      %p158 = scmp.ne.s32.totalorder %s153, %s155
      %p159 = scmp.eq.s32.totalorder %s21, 0
      %p160 = por %p158, %p159
      %p161 = scmp.ne.s32.totalorder %s153, %s155
      %p162 = scmp.eq.s32.totalorder %s26, 1
      %p163 = por %p161, %p162
      %p164 = scmp.ne.s32.totalorder %s155, %s156
      %p165 = scmp.eq.s32.totalorder %s26, 0
      %p166 = por %p164, %p165
      %p167 = scmp.ne.s32.totalorder %s155, %s156
      %p168 = scmp.eq.s32.totalorder %s27, 1
      %p169 = por %p167, %p168
      %p171 = scmp.ne.s32.totalorder %s156, %s170
      %p172 = scmp.eq.s32.totalorder %s27, 0
      %p173 = por %p171, %p172
      %s175 = sadd.s32 %s174, 1
      %p178 = scmp.eq.s32.totalorder %s21, 1
      %p179 = scmp.ne.s32.totalorder %s174, %s176
      %p180 = scmp.eq.s32.totalorder %s21, 0
      %p181 = por %p179, %p180
      %p182 = scmp.ne.s32.totalorder %s174, %s176
      %p183 = scmp.eq.s32.totalorder %s26, 1
      %p184 = por %p182, %p183
      %p185 = scmp.ne.s32.totalorder %s176, %s177
      %p186 = scmp.eq.s32.totalorder %s26, 0
      %p187 = por %p185, %p186
      %p188 = scmp.ne.s32.totalorder %s176, %s177
      %p189 = scmp.eq.s32.totalorder %s27, 1
      %p190 = por %p188, %p189
      %p192 = scmp.ne.s32.totalorder %s177, %s191
      %p193 = scmp.eq.s32.totalorder %s27, 0
      %p194 = por %p192, %p193
      %s195 = smul.u32 %s29, 2
      %s196 = ssub.s32 0, %s195
      %s197 = smul.u32 %s28, %s196
      %s198 = sadd.s32 %s29, %s197
      %s199 = smul.u32 %s36, 2
      %s200 = ssub.s32 0, %s199
      %s201 = smul.u32 %s40, %s200
      %s202 = sadd.s32 %s36, %s201
      %s203 = ssub.s32 %s28, %s40
      %s204 = ssub.s32 %s198, %s202
      %s205 = sor.u32 %s203, %s204
      %p206 = scmp.eq.s32.totalorder %s205, 0
      %s208 = sadd.s32 %s207, 1
      %s209 = scalar_select %p206, %s207, %s208
      %p212 = pneg %p206
      %p213 = scmp.eq.s32.totalorder %s21, 1
      %p214 = por %p212, %p213
      %p215 = scmp.ne.s32.totalorder %s207, %s210
      %p216 = scmp.eq.s32.totalorder %s21, 0
      %p217 = por %p215, %p216
      %p218 = scmp.ne.s32.totalorder %s207, %s210
      %p219 = scmp.eq.s32.totalorder %s26, 1
      %p220 = por %p218, %p219
      %p221 = scmp.ne.s32.totalorder %s210, %s211
      %p222 = scmp.eq.s32.totalorder %s26, 0
      %p223 = por %p221, %p222
      %p224 = scmp.ne.s32.totalorder %s210, %s211
      %p225 = scmp.eq.s32.totalorder %s27, 1
      %p226 = por %p224, %p225
      %p228 = scmp.ne.s32.totalorder %s211, %s227
      %p229 = scmp.eq.s32.totalorder %s27, 0
      %p230 = por %p228, %p229
      %p231 = scmp.le.s32.totalorder 1, %s21
      %p232 = scmp.lt.s32.totalorder %s21, 3
      %p233 = pnand %p231, %p232
      %p234 = pneg %p233
      // Predicated region
      $region9: #{tpu_custom_call.1} parent=5 // pred_check
        _
      $region10: #{tpu_custom_call.1} parent=5 // pred_check_branch
        %236 = sbr.rel (%p233) target = $region12
      $region11: #{tpu_custom_call.1} parent=5 // pred_region
        %s237 = ssub.s32 %s21, 1
        // Predicated region
        $region13: #{tpu_custom_call.1} parent=11 // pred_check
          %p238 = pneg %p166
        $region14: #{tpu_custom_call.1} parent=11 // pred_check_branch
          %240 = sbr.rel (%p238) target = $region16
        $region15: #{tpu_custom_call.1} parent=11 // pred_region
          _
        $region16: #{tpu_custom_call.1} parent=11 // pred_fallthru
          _
        // Predicated region
        $region17: #{tpu_custom_call.1} parent=11 // pred_check
          %p241 = pneg %p187
        $region18: #{tpu_custom_call.1} parent=11 // pred_check_branch
          %243 = sbr.rel (%p241) target = $region20
        $region19: #{tpu_custom_call.1} parent=11 // pred_region
          _
        $region20: #{tpu_custom_call.1} parent=11 // pred_fallthru
          _
      $region12: #{tpu_custom_call.1} parent=5 // pred_fallthru
        _
      %p244 = scmp.lt.s32.totalorder %s21, 2
      // Predicated region
      $region21: #{tpu_custom_call.1} parent=5 // pred_check
        %p245 = pneg %p244
      $region22: #{tpu_custom_call.1} parent=5 // pred_check_branch
        %247 = sbr.rel (%p245) target = $region24
      $region23: #{tpu_custom_call.1} parent=5 // pred_region
        // Predicated region
        $region25: #{tpu_custom_call.1} parent=23 // pred_check
          %p248 = pneg %p61
        $region26: #{tpu_custom_call.1} parent=23 // pred_check_branch
          %250 = sbr.rel (%p248) target = $region28
        $region27: #{tpu_custom_call.1} parent=23 // pred_region
          %s251 = sand.u32 %s51, 1
          %s252 = scalar_lea.sflag [#allocation6], %s251
          %s253 = sand.u32 %s51, 1
          %s254 = smul.addr %s253, 16
          %s255 = scalar_lea.vmem [#allocation5], %s254
          %s256 = smul.u32 %s29, 2
          %s257 = ssub.s32 0, %s256
          %s258 = smul.u32 %s28, %s257
          %s259 = sadd.s32 %s29, %s258
          %s260 = smul.u32 2, %s259
          %s262 = ssub.s32 256, 256
          %263 = vsyncadd %s252, %s262
          %s264 = smul.addr %s260, 128
          %s265 = scalar_lea.hbm %s0, %s264
          %s266 = sshll.u32 %s255, 4
          %s267 = int_to_ptr.vmem [resolvable:$true] %s266
          %272 = dma.hbm_to_vmem [thread:$0]  %s265, 256, %s267, %s252, 128, 128, 8
        $region28: #{tpu_custom_call.1} parent=23 // pred_fallthru
          _
        // Predicated region
        $region29: #{tpu_custom_call.1} parent=23 // pred_check
          %p273 = pneg %p87
        $region30: #{tpu_custom_call.1} parent=23 // pred_check_branch
          %275 = sbr.rel (%p273) target = $region32
        $region31: #{tpu_custom_call.1} parent=23 // pred_region
          %s276 = sand.u32 %s21, 1
          %s277 = scalar_lea.sflag [#allocation9], %s276
          %s278 = sand.u32 %s77, 1
          %s279 = smul.addr %s278, 32
          %s280 = scalar_lea.vmem [#allocation8], %s279
          %s282 = ssub.s32 512, 512
          %283 = vsyncadd %s277, %s282
          %s284 = smul.addr %s28, 4
          %s285 = smul.addr %s284, 128
          %s286 = scalar_lea.hbm %s1, %s285
          %s287 = sshll.u32 %s280, 4
          %s288 = int_to_ptr.vmem [resolvable:$true] %s287
          %293 = dma.hbm_to_vmem [thread:$0]  %s286, 512, %s288, %s277, 128, 128, 8
        $region32: #{tpu_custom_call.1} parent=23 // pred_fallthru
          _
        // Predicated region
        $region33: #{tpu_custom_call.1} parent=23 // pred_check
          %p294 = pneg %p113
        $region34: #{tpu_custom_call.1} parent=23 // pred_check_branch
          %296 = sbr.rel (%p294) target = $region36
        $region35: #{tpu_custom_call.1} parent=23 // pred_region
          %s297 = sand.u32 %s21, 1
          %s298 = scalar_lea.sflag [#allocation9], %s297
          %s299 = sand.u32 %s103, 1
          %s300 = smul.addr %s299, 32
          %s301 = scalar_lea.vmem [#allocation10], %s300
          %s303 = ssub.s32 512, 512
          %304 = vsyncadd %s298, %s303
          %s305 = smul.addr %s28, 4
          %s306 = smul.addr %s305, 128
          %s307 = scalar_lea.hbm %s2, %s306
          %s308 = sshll.u32 %s301, 4
          %s309 = int_to_ptr.vmem [resolvable:$true] %s308
          %314 = dma.hbm_to_vmem [thread:$0]  %s307, 512, %s309, %s298, 128, 128, 8
        $region36: #{tpu_custom_call.1} parent=23 // pred_fallthru
          _
        // Predicated region
        $region37: #{tpu_custom_call.1} parent=23 // pred_check
          %p315 = pneg %p139
        $region38: #{tpu_custom_call.1} parent=23 // pred_check_branch
          %317 = sbr.rel (%p315) target = $region40
        $region39: #{tpu_custom_call.1} parent=23 // pred_region
          %p318 = scmp.lt.s32.totalorder %s28, 1
          %s319 = scalar_select %p318, %s28, 1
          %s320 = scalar_lea.vmem %s3, %s319
        $region40: #{tpu_custom_call.1} parent=23 // pred_fallthru
          _
      $region24: #{tpu_custom_call.1} parent=5 // pred_fallthru
        _
      %p321 = scmp.le.s32.totalorder 1, %s21
      %p322 = scmp.lt.s32.totalorder %s21, 3
      %p323 = pnand %p321, %p322
      %p324 = pneg %p323
      // Predicated region
      $region41: #{tpu_custom_call.1} parent=5 // pred_check
        _
      $region42: #{tpu_custom_call.1} parent=5 // pred_check_branch
        %326 = sbr.rel (%p323) target = $region44
      $region43: #{tpu_custom_call.1} parent=5 // pred_region
        %s327 = ssub.s32 %s21, 1
        %s328 = sand.u32 %s54, 1
        %s329 = scalar_lea.sflag [#allocation6], %s328
        %s330 = sand.u32 %s54, 1
        %s331 = smul.addr %s330, 16
        %s332 = scalar_lea.vmem [#allocation5], %s331
        // Predicated region
        $region45: #{tpu_custom_call.1} parent=43 // pred_check
          %p333 = pneg %p67
        $region46: #{tpu_custom_call.1} parent=43 // pred_check_branch
          %335 = sbr.rel (%p333) target = $region48
        $region47: #{tpu_custom_call.1} parent=43 // pred_region
          %336 = dma.done %s329, 256
        $region48: #{tpu_custom_call.1} parent=43 // pred_fallthru
          _
        %s337 = sand.u32 %s26, 1
        %s338 = scalar_lea.sflag [#allocation9], %s337
        %s339 = sand.u32 %s80, 1
        %s340 = smul.addr %s339, 32
        %s341 = scalar_lea.vmem [#allocation8], %s340
        // Predicated region
        $region49: #{tpu_custom_call.1} parent=43 // pred_check
          %p342 = pneg %p93
        $region50: #{tpu_custom_call.1} parent=43 // pred_check_branch
          %344 = sbr.rel (%p342) target = $region52
        $region51: #{tpu_custom_call.1} parent=43 // pred_region
          %345 = dma.done %s338, 512
        $region52: #{tpu_custom_call.1} parent=43 // pred_fallthru
          _
        %s346 = sand.u32 %s26, 1
        %s347 = scalar_lea.sflag [#allocation9], %s346
        %s348 = sand.u32 %s106, 1
        %s349 = smul.addr %s348, 32
        %s350 = scalar_lea.vmem [#allocation10], %s349
        // Predicated region
        $region53: #{tpu_custom_call.1} parent=43 // pred_check
          %p351 = pneg %p119
        $region54: #{tpu_custom_call.1} parent=43 // pred_check_branch
          %353 = sbr.rel (%p351) target = $region56
        $region55: #{tpu_custom_call.1} parent=43 // pred_region
          %354 = dma.done %s347, 512
        $region56: #{tpu_custom_call.1} parent=43 // pred_fallthru
          _
        %s355 = sand.u32 %s54, 1
        %s356 = scalar_lea.sflag [#allocation6], %s355
        %s357 = sand.u32 %s54, 1
        %s358 = smul.addr %s357, 16
        %s359 = scalar_lea.vmem [#allocation5], %s358
        %p360 = pneg %p67
        %p361 = pneg %p64
        %s362 = sand.u32 %s26, 1
        %s363 = scalar_lea.sflag [#allocation9], %s362
        %s364 = sand.u32 %s80, 1
        %s365 = smul.addr %s364, 32
        %s366 = scalar_lea.vmem [#allocation8], %s365
        %p367 = pneg %p93
        %p368 = pneg %p90
        %s369 = sand.u32 %s26, 1
        %s370 = scalar_lea.sflag [#allocation9], %s369
        %s371 = sand.u32 %s106, 1
        %s372 = smul.addr %s371, 32
        %s373 = scalar_lea.vmem [#allocation10], %s372
        %p374 = pneg %p119
        %p375 = pneg %p116
        %p376 = scmp.lt.s32.totalorder %s30, 1
        %s377 = scalar_select %p376, %s30, 1
        %s378 = scalar_lea.vmem %s3, %s377
        %p379 = pneg %p145
        %p380 = pneg %p142
        %p381 = pneg %p166
        %p382 = pneg %p163
        %p383 = pneg %p187
        %p384 = pneg %p184
        %p385 = pneg %p223
        %p386 = pneg %p220
        %s387 = sand.u32 %s210, 1
        %s388 = scalar_lea.sflag [#allocation7], %s387
        %s389 = sand.u32 %s210, 1
        %s390 = smul.addr %s389, 16
        %s391 = scalar_lea.vmem [#allocation11], %s390
        %s392 = smul.u32 %s31, 2
        %s393 = ssub.s32 0, %s392
        %s394 = smul.u32 %s30, %s393
        %s395 = sadd.s32 %s31, %s394
        %s396 = smul.u32 2, %s395
        %p397 = scmp.lt.s32.totalorder %s30, 1
        %s398 = scalar_select %p397, %s30, 1
        %s399 = scalar_lea.vmem %s3, %s398
        %s400 = smul.u32 %s31, 2
        %s401 = ssub.s32 0, %s400
        %s402 = smul.u32 %s30, %s401
        %s403 = sadd.s32 %s31, %s402
        %s404 = smul.u32 2, %s403
        %v405 = vld [vmem:[%s332] sm:$0xff]
        %v406 = vld [vmem:[%s332 + $0x8] sm:$0xff]
        %vm407 = vcmask 261120
        %v408 = vsel %vm407, %v405, 0.0
        %409 = vadd.xlane.f32.xlu0 %v408
        %v410 = vpop.xlane.xlu0 %409
        %v411 = vsel %vm407, %v406, 0.0
        %412 = vadd.xlane.f32.xlu0 %v411
        %v413 = vpop.xlane.xlu0 %412
        %v414 = vrcp.pop 32.0
        %v415 = vmul.f32 %v410, %v414
        %v416 = vmul.f32 %v413, %v414
        %v417 = vsub.f32 %v405, %v415
        %v418 = vsub.f32 %v406, %v416
        %v419 = vmul.f32 %v417, %v417
        %v420 = vmul.f32 %v418, %v418
        %v421 = vsel %vm407, %v419, 0.0
        %422 = vadd.xlane.f32.xlu0 %v421
        %v423 = vpop.xlane.xlu0 %422
        %v424 = vsel %vm407, %v420, 0.0
        %425 = vadd.xlane.f32.xlu0 %v424
        %v426 = vpop.xlane.xlu0 %425
        %v427 = vmul.f32 %v423, %v414
        %v428 = vmul.f32 %v426, %v414
        %v429 = vadd.f32 %v427, 1e-05
        %v430 = vadd.f32 %v428, 1e-05
        %v431 = vrsqrt.pop %v429
        %v432 = vrsqrt.pop %v430
        %v433 = vmul.f32 %v417, %v431
        %v434 = vmul.f32 %v418, %v432
        %v435 = vld [vmem:[%s4] sm:$0x1]
        %v437 = vlaneseq
        %v438 = vshrl.u32 %v437, 7
        %v439 = vsub.s32 0, %v438
        %v440 = vrot.slane %v435, %v439
        %v442 = vmul.f32 %v433, %v440
        %v443 = vmul.f32 %v434, %v440
        %v444 = vld [vmem:[%s5] sm:$0x1]
        %v446 = vlaneseq
        %v447 = vshrl.u32 %v446, 7
        %v448 = vsub.s32 0, %v447
        %v449 = vrot.slane %v444, %v448
        %v451 = vadd.f32 %v442, %v449
        %v452 = vadd.f32 %v443, %v449
        %v453 = vld [vmem:[%s341] sm:$0xff]
        %v454 = vld [vmem:[%s341 + $0x8] sm:$0xff]
        %v455 = vld [vmem:[%s341 + $0x10] sm:$0xff]
        %v456 = vld [vmem:[%s341 + $0x18] sm:$0xff]
        %v457 = vld [vmem:[%s399] sm:$0x1]
        %v459 = vlaneseq
        %v460 = vshrl.u32 %v459, 7
        %v461 = vsub.s32 0, %v460
        %v462 = vrot.slane %v457, %v461
        %v465 = vsel %vm407, %v451, 0
        %v468 = vsel %vm407, %v452, 0
        %470 = vmatprep.subr.mxu0 0.0
        %471 = vmatpush1.msra.mxu0 %v453
        %472 = vmatprep.subr.mxu0 0.0
        %473 = vmatpush1.msra.mxu0 %v454
        %474 = vmatprep.subr.mxu0 0.0
        %475 = vmatpush1.msra.mxu0 %v455
        %476 = vmatprep.subr.mxu0 0.0
        %477 = vmatpush1.msra.mxu0 %v456
        %478 = vmatprep.subr.mxu0 0.0
        %479 = vmatpush1.msra.mxu0 0.0
        %480 = vmatprep.subr.mxu0 0.0
        %481 = vmatpush1.msra.mxu0 0.0
        %482 = vmatprep.subr.mxu0 0.0
        %483 = vmatpush1.msra.mxu0 0.0
        %484 = vmatprep.subr.mxu0 0.0
        %485 = vmatpush1.msra.mxu0 0.0
        %486 = vmatprep.subr.mxu0 0.0
        %487 = vmatpush1.msra.mxu0 0.0
        %488 = vmatprep.subr.mxu0 0.0
        %489 = vmatpush1.msra.mxu0 0.0
        %490 = vmatprep.subr.mxu0 0.0
        %491 = vmatpush1.msra.mxu0 0.0
        %492 = vmatprep.subr.mxu0 0.0
        %493 = vmatpush1.msra.mxu0 0.0
        %494 = vmatprep.subr.mxu0 0.0
        %495 = vmatpush1.msra.mxu0 0.0
        %496 = vmatprep.subr.mxu0 0.0
        %497 = vmatpush1.msra.mxu0 0.0
        %498 = vmatprep.subr.mxu0 0.0
        %499 = vmatpush1.msra.mxu0 0.0
        %500 = vmatprep.subr.mxu0 0.0
        %501 = vmatpush1.msra.mxu0 0.0
        %502 = vmatprep.subr.mxu0 0.0
        %503 = vmatpush1.msra.mxu0 0.0
        %504 = vmatprep.subr.mxu0 0.0
        %505 = vmatpush1.msra.mxu0 0.0
        %506 = vmatprep.subr.mxu0 0.0
        %507 = vmatpush1.msra.mxu0 0.0
        %508 = vmatprep.subr.mxu0 0.0
        %509 = vmatpush1.msra.mxu0 0.0
        %510 = vmatprep.subr.mxu0 0.0
        %511 = vmatpush1.msra.mxu0 0.0
        %512 = vmatprep.subr.mxu0 0.0
        %513 = vmatpush1.msra.mxu0 0.0
        %514 = vmatprep.subr.mxu0 0.0
        %515 = vmatpush1.msra.mxu0 0.0
        %516 = vmatprep.subr.mxu0 0.0
        %517 = vmatpush1.msra.mxu0 0.0
        %518 = vmatprep.subr.mxu0 0.0
        %519 = vmatpush1.msra.mxu0 0.0
        %520 = vmatprep.subr.mxu0 0.0
        %521 = vmatpush1.msra.mxu0 0.0
        %522 = vmatprep.subr.mxu0 0.0
        %523 = vmatpush1.msra.mxu0 0.0
        %524 = vmatprep.subr.mxu0 0.0
        %525 = vmatpush1.msra.mxu0 0.0
        %526 = vmatprep.subr.mxu0 0.0
        %527 = vmatpush1.msra.mxu0 0.0
        %528 = vmatprep.subr.mxu0 0.0
        %529 = vmatpush1.msra.mxu0 0.0
        %530 = vmatprep.subr.mxu0 0.0
        %531 = vmatpush1.msra.mxu0 0.0
        %532 = vmatprep.subr.mxu0 0.0
        %533 = vmatpush1.msra.mxu0 0.0
        %534 = vmatprep.mubr.f32.mxu0 0.0
        %535 = vmatmul.mubr.f32.gmra.mrb[0].mxu0 %v465
        %v536 = vpop.f32.mrb[0].mxu0
        %v537 = vadd.f32 %v462, %v536
        %v538 = vpop.f32.mrb[0].mxu0
        %539 = vmatprep.mubr.f32.mxu0 0.0
        %540 = vmatmul.mubr.f32.gmra.mrb[0].mxu0 %v468
        %v541 = vpop.f32.mrb[0].mxu0
        %v542 = vadd.f32 %v462, %v541
        %v543 = vpop.f32.mrb[0].mxu0
        %544 = vdwg.mxu0
        %545 = vst [vmem:[#allocation2] sm:$0xff] %v537
        %546 = vst [vmem:[#allocation2 + $0x8] sm:$0xff] %v542
        %p547 = scmp.eq.s32.totalorder %s31, 0
        // Predicated region
        $region57: #{tpu_custom_call.1} parent=43 // pred_check
          %p548 = pneg %p547
        $region58: #{tpu_custom_call.1} parent=43 // pred_check_branch
          %550 = sbr.rel (%p548) target = $region60
        $region59: #{tpu_custom_call.1} parent=43 // pred_region
          %vm551 = vcmask 254976
          %552 = vst.msk [vmem:[#allocation3] sm:$0x3] %vm551, 0.0
          %553 = vst.msk [vmem:[#allocation4] sm:$0x3] %vm551, 0.0
        $region60: #{tpu_custom_call.1} parent=43 // pred_fallthru
          _
        %v554 = vld [vmem:[%s350] sm:$0xff]
        %v555 = vld [vmem:[%s350 + $0x8] sm:$0xff]
        %v556 = vld [vmem:[%s350 + $0x10] sm:$0xff]
        %v557 = vld [vmem:[%s350 + $0x18] sm:$0xff]
        %s558 = smul.u32 %s30, 14
        %v559 = vld [vmem:[#allocation3] sm:$0x3]
        %v560 = vld [vmem:[#allocation4] sm:$0x3]
        %s561 = scalar_lea.vmem [#allocation2], %s558
        %v562 = vld [vmem:[%s561] sm:$0x3]
        %v564 = vsel %vm407, %v559, 0
        %566 = vmatprep.subr.mxu0 0.0
        %567 = vmatpush1.msra.mxu0 %v554
        %568 = vmatprep.subr.mxu0 0.0
        %569 = vmatpush1.msra.mxu0 %v555
        %570 = vmatprep.subr.mxu0 0.0
        %571 = vmatpush1.msra.mxu0 %v556
        %572 = vmatprep.subr.mxu0 0.0
        %573 = vmatpush1.msra.mxu0 %v557
        %574 = vmatprep.subr.mxu0 0.0
        %575 = vmatpush1.msra.mxu0 0.0
        %576 = vmatprep.subr.mxu0 0.0
        %577 = vmatpush1.msra.mxu0 0.0
        %578 = vmatprep.subr.mxu0 0.0
        %579 = vmatpush1.msra.mxu0 0.0
        %580 = vmatprep.subr.mxu0 0.0
        %581 = vmatpush1.msra.mxu0 0.0
        %582 = vmatprep.subr.mxu0 0.0
        %583 = vmatpush1.msra.mxu0 0.0
        %584 = vmatprep.subr.mxu0 0.0
        %585 = vmatpush1.msra.mxu0 0.0
        %586 = vmatprep.subr.mxu0 0.0
        %587 = vmatpush1.msra.mxu0 0.0
        %588 = vmatprep.subr.mxu0 0.0
        %589 = vmatpush1.msra.mxu0 0.0
        %590 = vmatprep.subr.mxu0 0.0
        %591 = vmatpush1.msra.mxu0 0.0
        %592 = vmatprep.subr.mxu0 0.0
        %593 = vmatpush1.msra.mxu0 0.0
        %594 = vmatprep.subr.mxu0 0.0
        %595 = vmatpush1.msra.mxu0 0.0
        %596 = vmatprep.subr.mxu0 0.0
        %597 = vmatpush1.msra.mxu0 0.0
        %598 = vmatprep.subr.mxu0 0.0
        %599 = vmatpush1.msra.mxu0 0.0
        %600 = vmatprep.subr.mxu0 0.0
        %601 = vmatpush1.msra.mxu0 0.0
        %602 = vmatprep.subr.mxu0 0.0
        %603 = vmatpush1.msra.mxu0 0.0
        %604 = vmatprep.subr.mxu0 0.0
        %605 = vmatpush1.msra.mxu0 0.0
        %606 = vmatprep.subr.mxu0 0.0
        %607 = vmatpush1.msra.mxu0 0.0
        %608 = vmatprep.subr.mxu0 0.0
        %609 = vmatpush1.msra.mxu0 0.0
        %610 = vmatprep.subr.mxu0 0.0
        %611 = vmatpush1.msra.mxu0 0.0
        %612 = vmatprep.subr.mxu0 0.0
        %613 = vmatpush1.msra.mxu0 0.0
        %614 = vmatprep.subr.mxu0 0.0
        %615 = vmatpush1.msra.mxu0 0.0
        %616 = vmatprep.subr.mxu0 0.0
        %617 = vmatpush1.msra.mxu0 0.0
        %618 = vmatprep.subr.mxu0 0.0
        %619 = vmatpush1.msra.mxu0 0.0
        %620 = vmatprep.subr.mxu0 0.0
        %621 = vmatpush1.msra.mxu0 0.0
        %622 = vmatprep.subr.mxu0 0.0
        %623 = vmatpush1.msra.mxu0 0.0
        %624 = vmatprep.subr.mxu0 0.0
        %625 = vmatpush1.msra.mxu0 0.0
        %626 = vmatprep.subr.mxu0 0.0
        %627 = vmatpush1.msra.mxu0 0.0
        %628 = vmatprep.subr.mxu0 0.0
        %629 = vmatpush1.msra.mxu0 0.0
        %630 = vmatprep.mubr.f32.mxu0 0.0
        %631 = vmatmul.mubr.f32.gmra.mrb[0].mxu0 %v564
        %v632 = vpop.f32.mrb[0].mxu0
        %v633 = vadd.f32 0.0, %v632
        %v634 = vpop.f32.mrb[0].mxu0
        %635 = vdwg.mxu0
        %v636 = vadd.f32 %v562, %v633
        %v637 = vxor.u32 %v636, 2147483648
        %v638 = vmul.f32 %v637, 1.442695
        %v639 = vpow.pop %v638
        %v640 = vadd.f32 %v639, 1.0
        %v641 = vrcp.pop %v640
        %v642 = vmul.f32 1.0, %v641
        %v643 = vtanh.pop %v636
        %645 = vrot.lane.b32.xlu0 %v560, 32
        %v646 = vpop.permute.xlu0 %645
        %v648 = vmul.f32 %v642, %v646
        %650 = vrot.lane.b32.xlu0 %v643, 64
        %v651 = vpop.permute.xlu0 %650
        %v653 = vmul.f32 %v642, %v651
        %655 = vrot.lane.b32.xlu0 %v653, 32
        %v656 = vpop.permute.xlu0 %655
        %v658 = vadd.f32 %v648, %v656
        %v659 = vtanh.pop %v658
        %661 = vrot.lane.b32.xlu0 %v659, 64
        %v662 = vpop.permute.xlu0 %661
        %v664 = vmul.f32 %v642, %v662
        %666 = vrot.lane.b32.xlu0 %v658, 96
        %v667 = vpop.permute.xlu0 %666
        %vm669 = vcmask 254976
        %670 = vst.msk [vmem:[#allocation4] sm:$0x3] %vm669, %v667
        %672 = vrot.lane.b32.xlu0 %v664, 32
        %v673 = vpop.permute.xlu0 %672
        %675 = vst.msk [vmem:[#allocation3] sm:$0x3] %vm669, %v673
        %s676 = scalar_lea.vmem %s391, %s558 [#allocation11]
        %677 = vst.msk [vmem:[%s676] sm:$0x3] %vm669, %v673
        %s678 = smul.u32 %s30, 5
        %s679 = sadd.s32 %s678, 1
        %s680 = smul.u32 %s679, 2
        %v681 = vld [vmem:[#allocation3] sm:$0x3]
        %v682 = vld [vmem:[#allocation4] sm:$0x3]
        %s683 = scalar_lea.vmem [#allocation2], %s680
        %v684 = vld [vmem:[%s683] sm:$0x3]
        %v686 = vsel %vm407, %v681, 0
        %688 = vmatprep.subr.mxu0 0.0
        %689 = vmatpush1.msra.mxu0 %v554
        %690 = vmatprep.subr.mxu0 0.0
        %691 = vmatpush1.msra.mxu0 %v555
        %692 = vmatprep.subr.mxu0 0.0
        %693 = vmatpush1.msra.mxu0 %v556
        %694 = vmatprep.subr.mxu0 0.0
        %695 = vmatpush1.msra.mxu0 %v557
        %696 = vmatprep.subr.mxu0 0.0
        %697 = vmatpush1.msra.mxu0 0.0
        %698 = vmatprep.subr.mxu0 0.0
        %699 = vmatpush1.msra.mxu0 0.0
        %700 = vmatprep.subr.mxu0 0.0
        %701 = vmatpush1.msra.mxu0 0.0
        %702 = vmatprep.subr.mxu0 0.0
        %703 = vmatpush1.msra.mxu0 0.0
        %704 = vmatprep.subr.mxu0 0.0
        %705 = vmatpush1.msra.mxu0 0.0
        %706 = vmatprep.subr.mxu0 0.0
        %707 = vmatpush1.msra.mxu0 0.0
        %708 = vmatprep.subr.mxu0 0.0
        %709 = vmatpush1.msra.mxu0 0.0
        %710 = vmatprep.subr.mxu0 0.0
        %711 = vmatpush1.msra.mxu0 0.0
        %712 = vmatprep.subr.mxu0 0.0
        %713 = vmatpush1.msra.mxu0 0.0
        %714 = vmatprep.subr.mxu0 0.0
        %715 = vmatpush1.msra.mxu0 0.0
        %716 = vmatprep.subr.mxu0 0.0
        %717 = vmatpush1.msra.mxu0 0.0
        %718 = vmatprep.subr.mxu0 0.0
        %719 = vmatpush1.msra.mxu0 0.0
        %720 = vmatprep.subr.mxu0 0.0
        %721 = vmatpush1.msra.mxu0 0.0
        %722 = vmatprep.subr.mxu0 0.0
        %723 = vmatpush1.msra.mxu0 0.0
        %724 = vmatprep.subr.mxu0 0.0
        %725 = vmatpush1.msra.mxu0 0.0
        %726 = vmatprep.subr.mxu0 0.0
        %727 = vmatpush1.msra.mxu0 0.0
        %728 = vmatprep.subr.mxu0 0.0
        %729 = vmatpush1.msra.mxu0 0.0
        %730 = vmatprep.subr.mxu0 0.0
        %731 = vmatpush1.msra.mxu0 0.0
        %732 = vmatprep.subr.mxu0 0.0
        %733 = vmatpush1.msra.mxu0 0.0
        %734 = vmatprep.subr.mxu0 0.0
        %735 = vmatpush1.msra.mxu0 0.0
        %736 = vmatprep.subr.mxu0 0.0
        %737 = vmatpush1.msra.mxu0 0.0
        %738 = vmatprep.subr.mxu0 0.0
        %739 = vmatpush1.msra.mxu0 0.0
        %740 = vmatprep.subr.mxu0 0.0
        %741 = vmatpush1.msra.mxu0 0.0
        %742 = vmatprep.subr.mxu0 0.0
        %743 = vmatpush1.msra.mxu0 0.0
        %744 = vmatprep.subr.mxu0 0.0
        %745 = vmatpush1.msra.mxu0 0.0
        %746 = vmatprep.subr.mxu0 0.0
        %747 = vmatpush1.msra.mxu0 0.0
        %748 = vmatprep.subr.mxu0 0.0
        %749 = vmatpush1.msra.mxu0 0.0
        %750 = vmatprep.subr.mxu0 0.0
        %751 = vmatpush1.msra.mxu0 0.0
        %752 = vmatprep.mubr.f32.mxu0 0.0
        %753 = vmatmul.mubr.f32.gmra.mrb[0].mxu0 %v686
        %v754 = vpop.f32.mrb[0].mxu0
        %v755 = vadd.f32 0.0, %v754
        %v756 = vpop.f32.mrb[0].mxu0
        %757 = vdwg.mxu0
        %v758 = vadd.f32 %v684, %v755
        %v759 = vxor.u32 %v758, 2147483648
        %v760 = vmul.f32 %v759, 1.442695
        %v761 = vpow.pop %v760
        %v762 = vadd.f32 %v761, 1.0
        %v763 = vrcp.pop %v762
        %v764 = vmul.f32 1.0, %v763
        %v765 = vtanh.pop %v758
        %767 = vrot.lane.b32.xlu0 %v682, 32
        %v768 = vpop.permute.xlu0 %767
        %v770 = vmul.f32 %v764, %v768
        %772 = vrot.lane.b32.xlu0 %v765, 64
        %v773 = vpop.permute.xlu0 %772
        %v775 = vmul.f32 %v764, %v773
        %777 = vrot.lane.b32.xlu0 %v775, 32
        %v778 = vpop.permute.xlu0 %777
        %v780 = vadd.f32 %v770, %v778
        %v781 = vtanh.pop %v780
        %783 = vrot.lane.b32.xlu0 %v781, 64
        %v784 = vpop.permute.xlu0 %783
        %v786 = vmul.f32 %v764, %v784
        %788 = vrot.lane.b32.xlu0 %v780, 96
        %v789 = vpop.permute.xlu0 %788
        %791 = vst.msk [vmem:[#allocation4] sm:$0x3] %vm669, %v789
        %793 = vrot.lane.b32.xlu0 %v786, 32
        %v794 = vpop.permute.xlu0 %793
        %796 = vst.msk [vmem:[#allocation3] sm:$0x3] %vm669, %v794
        %s797 = scalar_lea.vmem %s391, %s680 [#allocation11]
        %798 = vst.msk [vmem:[%s797] sm:$0x3] %vm669, %v794
        %s799 = smul.u32 %s30, 3
        %s800 = sadd.s32 %s799, 2
        %s801 = smul.u32 %s800, 2
        %v802 = vld [vmem:[#allocation3] sm:$0x3]
        %v803 = vld [vmem:[#allocation4] sm:$0x3]
        %s804 = scalar_lea.vmem [#allocation2], %s801
        %v805 = vld [vmem:[%s804] sm:$0x3]
        %v807 = vsel %vm407, %v802, 0
        %809 = vmatprep.subr.mxu0 0.0
        %810 = vmatpush1.msra.mxu0 %v554
        %811 = vmatprep.subr.mxu0 0.0
        %812 = vmatpush1.msra.mxu0 %v555
        %813 = vmatprep.subr.mxu0 0.0
        %814 = vmatpush1.msra.mxu0 %v556
        %815 = vmatprep.subr.mxu0 0.0
        %816 = vmatpush1.msra.mxu0 %v557
        %817 = vmatprep.subr.mxu0 0.0
        %818 = vmatpush1.msra.mxu0 0.0
        %819 = vmatprep.subr.mxu0 0.0
        %820 = vmatpush1.msra.mxu0 0.0
        %821 = vmatprep.subr.mxu0 0.0
        %822 = vmatpush1.msra.mxu0 0.0
        %823 = vmatprep.subr.mxu0 0.0
        %824 = vmatpush1.msra.mxu0 0.0
        %825 = vmatprep.subr.mxu0 0.0
        %826 = vmatpush1.msra.mxu0 0.0
        %827 = vmatprep.subr.mxu0 0.0
        %828 = vmatpush1.msra.mxu0 0.0
        %829 = vmatprep.subr.mxu0 0.0
        %830 = vmatpush1.msra.mxu0 0.0
        %831 = vmatprep.subr.mxu0 0.0
        %832 = vmatpush1.msra.mxu0 0.0
        %833 = vmatprep.subr.mxu0 0.0
        %834 = vmatpush1.msra.mxu0 0.0
        %835 = vmatprep.subr.mxu0 0.0
        %836 = vmatpush1.msra.mxu0 0.0
        %837 = vmatprep.subr.mxu0 0.0
        %838 = vmatpush1.msra.mxu0 0.0
        %839 = vmatprep.subr.mxu0 0.0
        %840 = vmatpush1.msra.mxu0 0.0
        %841 = vmatprep.subr.mxu0 0.0
        %842 = vmatpush1.msra.mxu0 0.0
        %843 = vmatprep.subr.mxu0 0.0
        %844 = vmatpush1.msra.mxu0 0.0
        %845 = vmatprep.subr.mxu0 0.0
        %846 = vmatpush1.msra.mxu0 0.0
        %847 = vmatprep.subr.mxu0 0.0
        %848 = vmatpush1.msra.mxu0 0.0
        %849 = vmatprep.subr.mxu0 0.0
        %850 = vmatpush1.msra.mxu0 0.0
        %851 = vmatprep.subr.mxu0 0.0
        %852 = vmatpush1.msra.mxu0 0.0
        %853 = vmatprep.subr.mxu0 0.0
        %854 = vmatpush1.msra.mxu0 0.0
        %855 = vmatprep.subr.mxu0 0.0
        %856 = vmatpush1.msra.mxu0 0.0
        %857 = vmatprep.subr.mxu0 0.0
        %858 = vmatpush1.msra.mxu0 0.0
        %859 = vmatprep.subr.mxu0 0.0
        %860 = vmatpush1.msra.mxu0 0.0
        %861 = vmatprep.subr.mxu0 0.0
        %862 = vmatpush1.msra.mxu0 0.0
        %863 = vmatprep.subr.mxu0 0.0
        %864 = vmatpush1.msra.mxu0 0.0
        %865 = vmatprep.subr.mxu0 0.0
        %866 = vmatpush1.msra.mxu0 0.0
        %867 = vmatprep.subr.mxu0 0.0
        %868 = vmatpush1.msra.mxu0 0.0
        %869 = vmatprep.subr.mxu0 0.0
        %870 = vmatpush1.msra.mxu0 0.0
        %871 = vmatprep.subr.mxu0 0.0
        %872 = vmatpush1.msra.mxu0 0.0
        %873 = vmatprep.mubr.f32.mxu0 0.0
        %874 = vmatmul.mubr.f32.gmra.mrb[0].mxu0 %v807
        %v875 = vpop.f32.mrb[0].mxu0
        %v876 = vadd.f32 0.0, %v875
        %v877 = vpop.f32.mrb[0].mxu0
        %878 = vdwg.mxu0
        %v879 = vadd.f32 %v805, %v876
        %v880 = vxor.u32 %v879, 2147483648
        %v881 = vmul.f32 %v880, 1.442695
        %v882 = vpow.pop %v881
        %v883 = vadd.f32 %v882, 1.0
        %v884 = vrcp.pop %v883
        %v885 = vmul.f32 1.0, %v884
        %v886 = vtanh.pop %v879
        %888 = vrot.lane.b32.xlu0 %v803, 32
        %v889 = vpop.permute.xlu0 %888
        %v891 = vmul.f32 %v885, %v889
        %893 = vrot.lane.b32.xlu0 %v886, 64
        %v894 = vpop.permute.xlu0 %893
        %v896 = vmul.f32 %v885, %v894
        %898 = vrot.lane.b32.xlu0 %v896, 32
        %v899 = vpop.permute.xlu0 %898
        %v901 = vadd.f32 %v891, %v899
        %v902 = vtanh.pop %v901
        %904 = vrot.lane.b32.xlu0 %v902, 64
        %v905 = vpop.permute.xlu0 %904
        %v907 = vmul.f32 %v885, %v905
        %909 = vrot.lane.b32.xlu0 %v901, 96
        %v910 = vpop.permute.xlu0 %909
        %912 = vst.msk [vmem:[#allocation4] sm:$0x3] %vm669, %v910
        %914 = vrot.lane.b32.xlu0 %v907, 32
        %v915 = vpop.permute.xlu0 %914
        %917 = vst.msk [vmem:[#allocation3] sm:$0x3] %vm669, %v915
        %s918 = scalar_lea.vmem %s391, %s801 [#allocation11]
        %919 = vst.msk [vmem:[%s918] sm:$0x3] %vm669, %v915
        %s920 = sadd.s32 %s30, 3
        %s921 = smul.u32 %s920, 2
        %v922 = vld [vmem:[#allocation3] sm:$0x3]
        %v923 = vld [vmem:[#allocation4] sm:$0x3]
        %s924 = scalar_lea.vmem [#allocation2], %s921
        %v925 = vld [vmem:[%s924] sm:$0x3]
        %v927 = vsel %vm407, %v922, 0
        %929 = vmatprep.subr.mxu0 0.0
        %930 = vmatpush1.msra.mxu0 %v554
        %931 = vmatprep.subr.mxu0 0.0
        %932 = vmatpush1.msra.mxu0 %v555
        %933 = vmatprep.subr.mxu0 0.0
        %934 = vmatpush1.msra.mxu0 %v556
        %935 = vmatprep.subr.mxu0 0.0
        %936 = vmatpush1.msra.mxu0 %v557
        %937 = vmatprep.subr.mxu0 0.0
        %938 = vmatpush1.msra.mxu0 0.0
        %939 = vmatprep.subr.mxu0 0.0
        %940 = vmatpush1.msra.mxu0 0.0
        %941 = vmatprep.subr.mxu0 0.0
        %942 = vmatpush1.msra.mxu0 0.0
        %943 = vmatprep.subr.mxu0 0.0
        %944 = vmatpush1.msra.mxu0 0.0
        %945 = vmatprep.subr.mxu0 0.0
        %946 = vmatpush1.msra.mxu0 0.0
        %947 = vmatprep.subr.mxu0 0.0
        %948 = vmatpush1.msra.mxu0 0.0
        %949 = vmatprep.subr.mxu0 0.0
        %950 = vmatpush1.msra.mxu0 0.0
        %951 = vmatprep.subr.mxu0 0.0
        %952 = vmatpush1.msra.mxu0 0.0
        %953 = vmatprep.subr.mxu0 0.0
        %954 = vmatpush1.msra.mxu0 0.0
        %955 = vmatprep.subr.mxu0 0.0
        %956 = vmatpush1.msra.mxu0 0.0
        %957 = vmatprep.subr.mxu0 0.0
        %958 = vmatpush1.msra.mxu0 0.0
        %959 = vmatprep.subr.mxu0 0.0
        %960 = vmatpush1.msra.mxu0 0.0
        %961 = vmatprep.subr.mxu0 0.0
        %962 = vmatpush1.msra.mxu0 0.0
        %963 = vmatprep.subr.mxu0 0.0
        %964 = vmatpush1.msra.mxu0 0.0
        %965 = vmatprep.subr.mxu0 0.0
        %966 = vmatpush1.msra.mxu0 0.0
        %967 = vmatprep.subr.mxu0 0.0
        %968 = vmatpush1.msra.mxu0 0.0
        %969 = vmatprep.subr.mxu0 0.0
        %970 = vmatpush1.msra.mxu0 0.0
        %971 = vmatprep.subr.mxu0 0.0
        %972 = vmatpush1.msra.mxu0 0.0
        %973 = vmatprep.subr.mxu0 0.0
        %974 = vmatpush1.msra.mxu0 0.0
        %975 = vmatprep.subr.mxu0 0.0
        %976 = vmatpush1.msra.mxu0 0.0
        %977 = vmatprep.subr.mxu0 0.0
        %978 = vmatpush1.msra.mxu0 0.0
        %979 = vmatprep.subr.mxu0 0.0
        %980 = vmatpush1.msra.mxu0 0.0
        %981 = vmatprep.subr.mxu0 0.0
        %982 = vmatpush1.msra.mxu0 0.0
        %983 = vmatprep.subr.mxu0 0.0
        %984 = vmatpush1.msra.mxu0 0.0
        %985 = vmatprep.subr.mxu0 0.0
        %986 = vmatpush1.msra.mxu0 0.0
        %987 = vmatprep.subr.mxu0 0.0
        %988 = vmatpush1.msra.mxu0 0.0
        %989 = vmatprep.subr.mxu0 0.0
        %990 = vmatpush1.msra.mxu0 0.0
        %991 = vmatprep.subr.mxu0 0.0
        %992 = vmatpush1.msra.mxu0 0.0
        %993 = vmatprep.mubr.f32.mxu0 0.0
        %994 = vmatmul.mubr.f32.gmra.mrb[0].mxu0 %v927
        %v995 = vpop.f32.mrb[0].mxu0
        %v996 = vadd.f32 0.0, %v995
        %v997 = vpop.f32.mrb[0].mxu0
        %998 = vdwg.mxu0
        %v999 = vadd.f32 %v925, %v996
        %v1000 = vxor.u32 %v999, 2147483648
        %v1001 = vmul.f32 %v1000, 1.442695
        %v1002 = vpow.pop %v1001
        %v1003 = vadd.f32 %v1002, 1.0
        %v1004 = vrcp.pop %v1003
        %v1005 = vmul.f32 1.0, %v1004
        %v1006 = vtanh.pop %v999
        %1008 = vrot.lane.b32.xlu0 %v923, 32
        %v1009 = vpop.permute.xlu0 %1008
        %v1011 = vmul.f32 %v1005, %v1009
        %1013 = vrot.lane.b32.xlu0 %v1006, 64
        %v1014 = vpop.permute.xlu0 %1013
        %v1016 = vmul.f32 %v1005, %v1014
        %1018 = vrot.lane.b32.xlu0 %v1016, 32
        %v1019 = vpop.permute.xlu0 %1018
        %v1021 = vadd.f32 %v1011, %v1019
        %v1022 = vtanh.pop %v1021
        %1024 = vrot.lane.b32.xlu0 %v1022, 64
        %v1025 = vpop.permute.xlu0 %1024
        %v1027 = vmul.f32 %v1005, %v1025
        %1029 = vrot.lane.b32.xlu0 %v1021, 96
        %v1030 = vpop.permute.xlu0 %1029
        %1032 = vst.msk [vmem:[#allocation4] sm:$0x3] %vm669, %v1030
        %1034 = vrot.lane.b32.xlu0 %v1027, 32
        %v1035 = vpop.permute.xlu0 %1034
        %1037 = vst.msk [vmem:[#allocation3] sm:$0x3] %vm669, %v1035
        %s1038 = scalar_lea.vmem %s391, %s921 [#allocation11]
        %1039 = vst.msk [vmem:[%s1038] sm:$0x3] %vm669, %v1035
        %s1040 = ssub.s32 4, %s30
        %s1041 = smul.u32 %s1040, 2
        %v1042 = vld [vmem:[#allocation3] sm:$0x3]
        %v1043 = vld [vmem:[#allocation4] sm:$0x3]
        %s1044 = scalar_lea.vmem [#allocation2], %s1041
        %v1045 = vld [vmem:[%s1044] sm:$0x3]
        %v1047 = vsel %vm407, %v1042, 0
        %1049 = vmatprep.subr.mxu0 0.0
        %1050 = vmatpush1.msra.mxu0 %v554
        %1051 = vmatprep.subr.mxu0 0.0
        %1052 = vmatpush1.msra.mxu0 %v555
        %1053 = vmatprep.subr.mxu0 0.0
        %1054 = vmatpush1.msra.mxu0 %v556
        %1055 = vmatprep.subr.mxu0 0.0
        %1056 = vmatpush1.msra.mxu0 %v557
        %1057 = vmatprep.subr.mxu0 0.0
        %1058 = vmatpush1.msra.mxu0 0.0
        %1059 = vmatprep.subr.mxu0 0.0
        %1060 = vmatpush1.msra.mxu0 0.0
        %1061 = vmatprep.subr.mxu0 0.0
        %1062 = vmatpush1.msra.mxu0 0.0
        %1063 = vmatprep.subr.mxu0 0.0
        %1064 = vmatpush1.msra.mxu0 0.0
        %1065 = vmatprep.subr.mxu0 0.0
        %1066 = vmatpush1.msra.mxu0 0.0
        %1067 = vmatprep.subr.mxu0 0.0
        %1068 = vmatpush1.msra.mxu0 0.0
        %1069 = vmatprep.subr.mxu0 0.0
        %1070 = vmatpush1.msra.mxu0 0.0
        %1071 = vmatprep.subr.mxu0 0.0
        %1072 = vmatpush1.msra.mxu0 0.0
        %1073 = vmatprep.subr.mxu0 0.0
        %1074 = vmatpush1.msra.mxu0 0.0
        %1075 = vmatprep.subr.mxu0 0.0
        %1076 = vmatpush1.msra.mxu0 0.0
        %1077 = vmatprep.subr.mxu0 0.0
        %1078 = vmatpush1.msra.mxu0 0.0
        %1079 = vmatprep.subr.mxu0 0.0
        %1080 = vmatpush1.msra.mxu0 0.0
        %1081 = vmatprep.subr.mxu0 0.0
        %1082 = vmatpush1.msra.mxu0 0.0
        %1083 = vmatprep.subr.mxu0 0.0
        %1084 = vmatpush1.msra.mxu0 0.0
        %1085 = vmatprep.subr.mxu0 0.0
        %1086 = vmatpush1.msra.mxu0 0.0
        %1087 = vmatprep.subr.mxu0 0.0
        %1088 = vmatpush1.msra.mxu0 0.0
        %1089 = vmatprep.subr.mxu0 0.0
        %1090 = vmatpush1.msra.mxu0 0.0
        %1091 = vmatprep.subr.mxu0 0.0
        %1092 = vmatpush1.msra.mxu0 0.0
        %1093 = vmatprep.subr.mxu0 0.0
        %1094 = vmatpush1.msra.mxu0 0.0
        %1095 = vmatprep.subr.mxu0 0.0
        %1096 = vmatpush1.msra.mxu0 0.0
        %1097 = vmatprep.subr.mxu0 0.0
        %1098 = vmatpush1.msra.mxu0 0.0
        %1099 = vmatprep.subr.mxu0 0.0
        %1100 = vmatpush1.msra.mxu0 0.0
        %1101 = vmatprep.subr.mxu0 0.0
        %1102 = vmatpush1.msra.mxu0 0.0
        %1103 = vmatprep.subr.mxu0 0.0
        %1104 = vmatpush1.msra.mxu0 0.0
        %1105 = vmatprep.subr.mxu0 0.0
        %1106 = vmatpush1.msra.mxu0 0.0
        %1107 = vmatprep.subr.mxu0 0.0
        %1108 = vmatpush1.msra.mxu0 0.0
        %1109 = vmatprep.subr.mxu0 0.0
        %1110 = vmatpush1.msra.mxu0 0.0
        %1111 = vmatprep.subr.mxu0 0.0
        %1112 = vmatpush1.msra.mxu0 0.0
        %1113 = vmatprep.mubr.f32.mxu0 0.0
        %1114 = vmatmul.mubr.f32.gmra.mrb[0].mxu0 %v1047
        %v1115 = vpop.f32.mrb[0].mxu0
        %v1116 = vadd.f32 0.0, %v1115
        %v1117 = vpop.f32.mrb[0].mxu0
        %1118 = vdwg.mxu0
        %v1119 = vadd.f32 %v1045, %v1116
        %v1120 = vxor.u32 %v1119, 2147483648
        %v1121 = vmul.f32 %v1120, 1.442695
        %v1122 = vpow.pop %v1121
        %v1123 = vadd.f32 %v1122, 1.0
        %v1124 = vrcp.pop %v1123
        %v1125 = vmul.f32 1.0, %v1124
        %v1126 = vtanh.pop %v1119
        %1128 = vrot.lane.b32.xlu0 %v1043, 32
        %v1129 = vpop.permute.xlu0 %1128
        %v1131 = vmul.f32 %v1125, %v1129
        %1133 = vrot.lane.b32.xlu0 %v1126, 64
        %v1134 = vpop.permute.xlu0 %1133
        %v1136 = vmul.f32 %v1125, %v1134
        %1138 = vrot.lane.b32.xlu0 %v1136, 32
        %v1139 = vpop.permute.xlu0 %1138
        %v1141 = vadd.f32 %v1131, %v1139
        %v1142 = vtanh.pop %v1141
        %1144 = vrot.lane.b32.xlu0 %v1142, 64
        %v1145 = vpop.permute.xlu0 %1144
        %v1147 = vmul.f32 %v1125, %v1145
        %1149 = vrot.lane.b32.xlu0 %v1141, 96
        %v1150 = vpop.permute.xlu0 %1149
        %1152 = vst.msk [vmem:[#allocation4] sm:$0x3] %vm669, %v1150
        %1154 = vrot.lane.b32.xlu0 %v1147, 32
        %v1155 = vpop.permute.xlu0 %1154
        %1157 = vst.msk [vmem:[#allocation3] sm:$0x3] %vm669, %v1155
        %s1158 = scalar_lea.vmem %s391, %s1041 [#allocation11]
        %1159 = vst.msk [vmem:[%s1158] sm:$0x3] %vm669, %v1155
        %s1160 = smul.u32 %s30, 4294967293
        %s1161 = sadd.s32 %s1160, 5
        %s1162 = smul.u32 %s1161, 2
        %v1163 = vld [vmem:[#allocation3] sm:$0x3]
        %v1164 = vld [vmem:[#allocation4] sm:$0x3]
        %s1165 = scalar_lea.vmem [#allocation2], %s1162
        %v1166 = vld [vmem:[%s1165] sm:$0x3]
        %v1168 = vsel %vm407, %v1163, 0
        %1170 = vmatprep.subr.mxu0 0.0
        %1171 = vmatpush1.msra.mxu0 %v554
        %1172 = vmatprep.subr.mxu0 0.0
        %1173 = vmatpush1.msra.mxu0 %v555
        %1174 = vmatprep.subr.mxu0 0.0
        %1175 = vmatpush1.msra.mxu0 %v556
        %1176 = vmatprep.subr.mxu0 0.0
        %1177 = vmatpush1.msra.mxu0 %v557
        %1178 = vmatprep.subr.mxu0 0.0
        %1179 = vmatpush1.msra.mxu0 0.0
        %1180 = vmatprep.subr.mxu0 0.0
        %1181 = vmatpush1.msra.mxu0 0.0
        %1182 = vmatprep.subr.mxu0 0.0
        %1183 = vmatpush1.msra.mxu0 0.0
        %1184 = vmatprep.subr.mxu0 0.0
        %1185 = vmatpush1.msra.mxu0 0.0
        %1186 = vmatprep.subr.mxu0 0.0
        %1187 = vmatpush1.msra.mxu0 0.0
        %1188 = vmatprep.subr.mxu0 0.0
        %1189 = vmatpush1.msra.mxu0 0.0
        %1190 = vmatprep.subr.mxu0 0.0
        %1191 = vmatpush1.msra.mxu0 0.0
        %1192 = vmatprep.subr.mxu0 0.0
        %1193 = vmatpush1.msra.mxu0 0.0
        %1194 = vmatprep.subr.mxu0 0.0
        %1195 = vmatpush1.msra.mxu0 0.0
        %1196 = vmatprep.subr.mxu0 0.0
        %1197 = vmatpush1.msra.mxu0 0.0
        %1198 = vmatprep.subr.mxu0 0.0
        %1199 = vmatpush1.msra.mxu0 0.0
        %1200 = vmatprep.subr.mxu0 0.0
        %1201 = vmatpush1.msra.mxu0 0.0
        %1202 = vmatprep.subr.mxu0 0.0
        %1203 = vmatpush1.msra.mxu0 0.0
        %1204 = vmatprep.subr.mxu0 0.0
        %1205 = vmatpush1.msra.mxu0 0.0
        %1206 = vmatprep.subr.mxu0 0.0
        %1207 = vmatpush1.msra.mxu0 0.0
        %1208 = vmatprep.subr.mxu0 0.0
        %1209 = vmatpush1.msra.mxu0 0.0
        %1210 = vmatprep.subr.mxu0 0.0
        %1211 = vmatpush1.msra.mxu0 0.0
        %1212 = vmatprep.subr.mxu0 0.0
        %1213 = vmatpush1.msra.mxu0 0.0
        %1214 = vmatprep.subr.mxu0 0.0
        %1215 = vmatpush1.msra.mxu0 0.0
        %1216 = vmatprep.subr.mxu0 0.0
        %1217 = vmatpush1.msra.mxu0 0.0
        %1218 = vmatprep.subr.mxu0 0.0
        %1219 = vmatpush1.msra.mxu0 0.0
        %1220 = vmatprep.subr.mxu0 0.0
        %1221 = vmatpush1.msra.mxu0 0.0
        %1222 = vmatprep.subr.mxu0 0.0
        %1223 = vmatpush1.msra.mxu0 0.0
        %1224 = vmatprep.subr.mxu0 0.0
        %1225 = vmatpush1.msra.mxu0 0.0
        %1226 = vmatprep.subr.mxu0 0.0
        %1227 = vmatpush1.msra.mxu0 0.0
        %1228 = vmatprep.subr.mxu0 0.0
        %1229 = vmatpush1.msra.mxu0 0.0
        %1230 = vmatprep.subr.mxu0 0.0
        %1231 = vmatpush1.msra.mxu0 0.0
        %1232 = vmatprep.subr.mxu0 0.0
        %1233 = vmatpush1.msra.mxu0 0.0
        %1234 = vmatprep.mubr.f32.mxu0 0.0
        %1235 = vmatmul.mubr.f32.gmra.mrb[0].mxu0 %v1168
        %v1236 = vpop.f32.mrb[0].mxu0
        %v1237 = vadd.f32 0.0, %v1236
        %v1238 = vpop.f32.mrb[0].mxu0
        %1239 = vdwg.mxu0
        %v1240 = vadd.f32 %v1166, %v1237
        %v1241 = vxor.u32 %v1240, 2147483648
        %v1242 = vmul.f32 %v1241, 1.442695
        %v1243 = vpow.pop %v1242
        %v1244 = vadd.f32 %v1243, 1.0
        %v1245 = vrcp.pop %v1244
        %v1246 = vmul.f32 1.0, %v1245
        %v1247 = vtanh.pop %v1240
        %1249 = vrot.lane.b32.xlu0 %v1164, 32
        %v1250 = vpop.permute.xlu0 %1249
        %v1252 = vmul.f32 %v1246, %v1250
        %1254 = vrot.lane.b32.xlu0 %v1247, 64
        %v1255 = vpop.permute.xlu0 %1254
        %v1257 = vmul.f32 %v1246, %v1255
        %1259 = vrot.lane.b32.xlu0 %v1257, 32
        %v1260 = vpop.permute.xlu0 %1259
        %v1262 = vadd.f32 %v1252, %v1260
        %v1263 = vtanh.pop %v1262
        %1265 = vrot.lane.b32.xlu0 %v1263, 64
        %v1266 = vpop.permute.xlu0 %1265
        %v1268 = vmul.f32 %v1246, %v1266
        %1270 = vrot.lane.b32.xlu0 %v1262, 96
        %v1271 = vpop.permute.xlu0 %1270
        %1273 = vst.msk [vmem:[#allocation4] sm:$0x3] %vm669, %v1271
        %1275 = vrot.lane.b32.xlu0 %v1268, 32
        %v1276 = vpop.permute.xlu0 %1275
        %1278 = vst.msk [vmem:[#allocation3] sm:$0x3] %vm669, %v1276
        %s1279 = scalar_lea.vmem %s391, %s1162 [#allocation11]
        %1280 = vst.msk [vmem:[%s1279] sm:$0x3] %vm669, %v1276
        %s1281 = smul.u32 %s30, 4294967291
        %s1282 = sadd.s32 %s1281, 6
        %s1283 = smul.u32 %s1282, 2
        %v1284 = vld [vmem:[#allocation3] sm:$0x3]
        %v1285 = vld [vmem:[#allocation4] sm:$0x3]
        %s1286 = scalar_lea.vmem [#allocation2], %s1283
        %v1287 = vld [vmem:[%s1286] sm:$0x3]
        %v1289 = vsel %vm407, %v1284, 0
        %1291 = vmatprep.subr.mxu0 0.0
        %1292 = vmatpush1.msra.mxu0 %v554
        %1293 = vmatprep.subr.mxu0 0.0
        %1294 = vmatpush1.msra.mxu0 %v555
        %1295 = vmatprep.subr.mxu0 0.0
        %1296 = vmatpush1.msra.mxu0 %v556
        %1297 = vmatprep.subr.mxu0 0.0
        %1298 = vmatpush1.msra.mxu0 %v557
        %1299 = vmatprep.subr.mxu0 0.0
        %1300 = vmatpush1.msra.mxu0 0.0
        %1301 = vmatprep.subr.mxu0 0.0
        %1302 = vmatpush1.msra.mxu0 0.0
        %1303 = vmatprep.subr.mxu0 0.0
        %1304 = vmatpush1.msra.mxu0 0.0
        %1305 = vmatprep.subr.mxu0 0.0
        %1306 = vmatpush1.msra.mxu0 0.0
        %1307 = vmatprep.subr.mxu0 0.0
        %1308 = vmatpush1.msra.mxu0 0.0
        %1309 = vmatprep.subr.mxu0 0.0
        %1310 = vmatpush1.msra.mxu0 0.0
        %1311 = vmatprep.subr.mxu0 0.0
        %1312 = vmatpush1.msra.mxu0 0.0
        %1313 = vmatprep.subr.mxu0 0.0
        %1314 = vmatpush1.msra.mxu0 0.0
        %1315 = vmatprep.subr.mxu0 0.0
        %1316 = vmatpush1.msra.mxu0 0.0
        %1317 = vmatprep.subr.mxu0 0.0
        %1318 = vmatpush1.msra.mxu0 0.0
        %1319 = vmatprep.subr.mxu0 0.0
        %1320 = vmatpush1.msra.mxu0 0.0
        %1321 = vmatprep.subr.mxu0 0.0
        %1322 = vmatpush1.msra.mxu0 0.0
        %1323 = vmatprep.subr.mxu0 0.0
        %1324 = vmatpush1.msra.mxu0 0.0
        %1325 = vmatprep.subr.mxu0 0.0
        %1326 = vmatpush1.msra.mxu0 0.0
        %1327 = vmatprep.subr.mxu0 0.0
        %1328 = vmatpush1.msra.mxu0 0.0
        %1329 = vmatprep.subr.mxu0 0.0
        %1330 = vmatpush1.msra.mxu0 0.0
        %1331 = vmatprep.subr.mxu0 0.0
        %1332 = vmatpush1.msra.mxu0 0.0
        %1333 = vmatprep.subr.mxu0 0.0
        %1334 = vmatpush1.msra.mxu0 0.0
        %1335 = vmatprep.subr.mxu0 0.0
        %1336 = vmatpush1.msra.mxu0 0.0
        %1337 = vmatprep.subr.mxu0 0.0
        %1338 = vmatpush1.msra.mxu0 0.0
        %1339 = vmatprep.subr.mxu0 0.0
        %1340 = vmatpush1.msra.mxu0 0.0
        %1341 = vmatprep.subr.mxu0 0.0
        %1342 = vmatpush1.msra.mxu0 0.0
        %1343 = vmatprep.subr.mxu0 0.0
        %1344 = vmatpush1.msra.mxu0 0.0
        %1345 = vmatprep.subr.mxu0 0.0
        %1346 = vmatpush1.msra.mxu0 0.0
        %1347 = vmatprep.subr.mxu0 0.0
        %1348 = vmatpush1.msra.mxu0 0.0
        %1349 = vmatprep.subr.mxu0 0.0
        %1350 = vmatpush1.msra.mxu0 0.0
        %1351 = vmatprep.subr.mxu0 0.0
        %1352 = vmatpush1.msra.mxu0 0.0
        %1353 = vmatprep.subr.mxu0 0.0
        %1354 = vmatpush1.msra.mxu0 0.0
        %1355 = vmatprep.mubr.f32.mxu0 0.0
        %1356 = vmatmul.mubr.f32.gmra.mrb[0].mxu0 %v1289
        %v1357 = vpop.f32.mrb[0].mxu0
        %v1358 = vadd.f32 0.0, %v1357
        %v1359 = vpop.f32.mrb[0].mxu0
        %1360 = vdwg.mxu0
        %v1361 = vadd.f32 %v1287, %v1358
        %v1362 = vxor.u32 %v1361, 2147483648
        %v1363 = vmul.f32 %v1362, 1.442695
        %v1364 = vpow.pop %v1363
        %v1365 = vadd.f32 %v1364, 1.0
        %v1366 = vrcp.pop %v1365
        %v1367 = vmul.f32 1.0, %v1366
        %v1368 = vtanh.pop %v1361
        %1370 = vrot.lane.b32.xlu0 %v1285, 32
        %v1371 = vpop.permute.xlu0 %1370
        %v1373 = vmul.f32 %v1367, %v1371
        %1375 = vrot.lane.b32.xlu0 %v1368, 64
        %v1376 = vpop.permute.xlu0 %1375
        %v1378 = vmul.f32 %v1367, %v1376
        %1380 = vrot.lane.b32.xlu0 %v1378, 32
        %v1381 = vpop.permute.xlu0 %1380
        %v1383 = vadd.f32 %v1373, %v1381
        %v1384 = vtanh.pop %v1383
        %1386 = vrot.lane.b32.xlu0 %v1384, 64
        %v1387 = vpop.permute.xlu0 %1386
        %v1389 = vmul.f32 %v1367, %v1387
        %1391 = vrot.lane.b32.xlu0 %v1383, 96
        %v1392 = vpop.permute.xlu0 %1391
        %1394 = vst.msk [vmem:[#allocation4] sm:$0x3] %vm669, %v1392
        %1396 = vrot.lane.b32.xlu0 %v1389, 32
        %v1397 = vpop.permute.xlu0 %1396
        %1399 = vst.msk [vmem:[#allocation3] sm:$0x3] %vm669, %v1397
        %s1400 = scalar_lea.vmem %s391, %s1283 [#allocation11]
        %1401 = vst.msk [vmem:[%s1400] sm:$0x3] %vm669, %v1397
        %s1402 = smul.u32 %s30, 4294967289
        %s1403 = sadd.s32 %s1402, 7
        %s1404 = smul.u32 %s1403, 2
        %v1405 = vld [vmem:[#allocation3] sm:$0x3]
        %v1406 = vld [vmem:[#allocation4] sm:$0x3]
        %s1407 = scalar_lea.vmem [#allocation2], %s1404
        %v1408 = vld [vmem:[%s1407] sm:$0x3]
        %v1410 = vsel %vm407, %v1405, 0
        %1412 = vmatprep.subr.mxu0 0.0
        %1413 = vmatpush1.msra.mxu0 %v554
        %1414 = vmatprep.subr.mxu0 0.0
        %1415 = vmatpush1.msra.mxu0 %v555
        %1416 = vmatprep.subr.mxu0 0.0
        %1417 = vmatpush1.msra.mxu0 %v556
        %1418 = vmatprep.subr.mxu0 0.0
        %1419 = vmatpush1.msra.mxu0 %v557
        %1420 = vmatprep.subr.mxu0 0.0
        %1421 = vmatpush1.msra.mxu0 0.0
        %1422 = vmatprep.subr.mxu0 0.0
        %1423 = vmatpush1.msra.mxu0 0.0
        %1424 = vmatprep.subr.mxu0 0.0
        %1425 = vmatpush1.msra.mxu0 0.0
        %1426 = vmatprep.subr.mxu0 0.0
        %1427 = vmatpush1.msra.mxu0 0.0
        %1428 = vmatprep.subr.mxu0 0.0
        %1429 = vmatpush1.msra.mxu0 0.0
        %1430 = vmatprep.subr.mxu0 0.0
        %1431 = vmatpush1.msra.mxu0 0.0
        %1432 = vmatprep.subr.mxu0 0.0
        %1433 = vmatpush1.msra.mxu0 0.0
        %1434 = vmatprep.subr.mxu0 0.0
        %1435 = vmatpush1.msra.mxu0 0.0
        %1436 = vmatprep.subr.mxu0 0.0
        %1437 = vmatpush1.msra.mxu0 0.0
        %1438 = vmatprep.subr.mxu0 0.0
        %1439 = vmatpush1.msra.mxu0 0.0
        %1440 = vmatprep.subr.mxu0 0.0
        %1441 = vmatpush1.msra.mxu0 0.0
        %1442 = vmatprep.subr.mxu0 0.0
        %1443 = vmatpush1.msra.mxu0 0.0
        %1444 = vmatprep.subr.mxu0 0.0
        %1445 = vmatpush1.msra.mxu0 0.0
        %1446 = vmatprep.subr.mxu0 0.0
        %1447 = vmatpush1.msra.mxu0 0.0
        %1448 = vmatprep.subr.mxu0 0.0
        %1449 = vmatpush1.msra.mxu0 0.0
        %1450 = vmatprep.subr.mxu0 0.0
        %1451 = vmatpush1.msra.mxu0 0.0
        %1452 = vmatprep.subr.mxu0 0.0
        %1453 = vmatpush1.msra.mxu0 0.0
        %1454 = vmatprep.subr.mxu0 0.0
        %1455 = vmatpush1.msra.mxu0 0.0
        %1456 = vmatprep.subr.mxu0 0.0
        %1457 = vmatpush1.msra.mxu0 0.0
        %1458 = vmatprep.subr.mxu0 0.0
        %1459 = vmatpush1.msra.mxu0 0.0
        %1460 = vmatprep.subr.mxu0 0.0
        %1461 = vmatpush1.msra.mxu0 0.0
        %1462 = vmatprep.subr.mxu0 0.0
        %1463 = vmatpush1.msra.mxu0 0.0
        %1464 = vmatprep.subr.mxu0 0.0
        %1465 = vmatpush1.msra.mxu0 0.0
        %1466 = vmatprep.subr.mxu0 0.0
        %1467 = vmatpush1.msra.mxu0 0.0
        %1468 = vmatprep.subr.mxu0 0.0
        %1469 = vmatpush1.msra.mxu0 0.0
        %1470 = vmatprep.subr.mxu0 0.0
        %1471 = vmatpush1.msra.mxu0 0.0
        %1472 = vmatprep.subr.mxu0 0.0
        %1473 = vmatpush1.msra.mxu0 0.0
        %1474 = vmatprep.subr.mxu0 0.0
        %1475 = vmatpush1.msra.mxu0 0.0
        %1476 = vmatprep.mubr.f32.mxu0 0.0
        %1477 = vmatmul.mubr.f32.gmra.mrb[0].mxu0 %v1410
        %v1478 = vpop.f32.mrb[0].mxu0
        %v1479 = vadd.f32 0.0, %v1478
        %v1480 = vpop.f32.mrb[0].mxu0
        %1481 = vdwg.mxu0
        %v1482 = vadd.f32 %v1408, %v1479
        %v1483 = vxor.u32 %v1482, 2147483648
        %v1484 = vmul.f32 %v1483, 1.442695
        %v1485 = vpow.pop %v1484
        %v1486 = vadd.f32 %v1485, 1.0
        %v1487 = vrcp.pop %v1486
        %v1488 = vmul.f32 1.0, %v1487
        %v1489 = vtanh.pop %v1482
        %1491 = vrot.lane.b32.xlu0 %v1406, 32
        %v1492 = vpop.permute.xlu0 %1491
        %v1494 = vmul.f32 %v1488, %v1492
        %1496 = vrot.lane.b32.xlu0 %v1489, 64
        %v1497 = vpop.permute.xlu0 %1496
        %v1499 = vmul.f32 %v1488, %v1497
        %1501 = vrot.lane.b32.xlu0 %v1499, 32
        %v1502 = vpop.permute.xlu0 %1501
        %v1504 = vadd.f32 %v1494, %v1502
        %v1505 = vtanh.pop %v1504
        %1507 = vrot.lane.b32.xlu0 %v1505, 64
        %v1508 = vpop.permute.xlu0 %1507
        %v1510 = vmul.f32 %v1488, %v1508
        %1512 = vrot.lane.b32.xlu0 %v1504, 96
        %v1513 = vpop.permute.xlu0 %1512
        %1515 = vst.msk [vmem:[#allocation4] sm:$0x3] %vm669, %v1513
        %1517 = vrot.lane.b32.xlu0 %v1510, 32
        %v1518 = vpop.permute.xlu0 %1517
        %1520 = vst.msk [vmem:[#allocation3] sm:$0x3] %vm669, %v1518
        %s1521 = scalar_lea.vmem %s391, %s1404 [#allocation11]
        %1522 = vst.msk [vmem:[%s1521] sm:$0x3] %vm669, %v1518
        %s1523 = sand.u32 %s210, 1
        %s1524 = scalar_lea.sflag [#allocation7], %s1523
        %s1525 = sand.u32 %s210, 1
        %s1526 = smul.addr %s1525, 16
        %s1527 = scalar_lea.vmem [#allocation11], %s1526
        // Predicated region
        $region61: #{tpu_custom_call.1} parent=43 // pred_check
          %p1528 = pneg %p220
        $region62: #{tpu_custom_call.1} parent=43 // pred_check_branch
          %1530 = sbr.rel (%p1528) target = $region64
        $region63: #{tpu_custom_call.1} parent=43 // pred_region
          %s1531 = smul.u32 %s31, 2
          %s1532 = ssub.s32 0, %s1531
          %s1533 = smul.u32 %s30, %s1532
          %s1534 = sadd.s32 %s31, %s1533
          %s1535 = smul.u32 2, %s1534
          %s1537 = ssub.s32 256, 256
          %1538 = vsyncadd %s1524, %s1537
          %s1539 = smul.addr %s30, 2
          %s1540 = sadd.s32 %s1535, %s1539
          %s1541 = smul.addr %s1540, 128
          %s1542 = scalar_lea.hbm %s6, %s1541
          %s1543 = sshll.u32 %s1527, 4
          %s1544 = int_to_ptr.vmem [resolvable:$true] %s1543
          %1549 = dma.vmem_to_hbm [thread:$0]  %s1544, 256, %s1542, %s1524, 128, 128, 8
        $region64: #{tpu_custom_call.1} parent=43 // pred_fallthru
          _
      $region44: #{tpu_custom_call.1} parent=5 // pred_fallthru
        _
      %p1550 = scmp.le.s32.totalorder 2, %s21
      // Predicated region
      $region65: #{tpu_custom_call.1} parent=5 // pred_check
        %p1551 = pneg %p1550
      $region66: #{tpu_custom_call.1} parent=5 // pred_check_branch
        %1553 = sbr.rel (%p1551) target = $region68
      $region67: #{tpu_custom_call.1} parent=5 // pred_region
        %s1554 = ssub.s32 %s21, 2
        // Predicated region
        $region69: #{tpu_custom_call.1} parent=67 // pred_check
          %p1555 = pneg %p226
        $region70: #{tpu_custom_call.1} parent=67 // pred_check_branch
          %1557 = sbr.rel (%p1555) target = $region72
        $region71: #{tpu_custom_call.1} parent=67 // pred_region
          %s1558 = sand.u32 %s211, 1
          %s1559 = scalar_lea.sflag [#allocation7], %s1558
          %s1560 = sand.u32 %s211, 1
          %s1561 = smul.addr %s1560, 16
          %s1562 = scalar_lea.vmem [#allocation11], %s1561
          %1563 = dma.done %s1559, 256
        $region72: #{tpu_custom_call.1} parent=67 // pred_fallthru
          _
      $region68: #{tpu_custom_call.1} parent=5 // pred_fallthru
        _
    $region6: #{tpu_custom_call.1} parent=1 // loop_footer
      %s25 = sadd.s32 1, %s21
    $region7: #{tpu_custom_call.1} parent=1 // loop_footer_branch
      %20 = sbr.rel target = $region3
    $region8: #{tpu_custom_call.1} parent=1 // loop_exit
      _
    %1564 = vsyncpa [#allocation6], 1
    %s1565 = scalar_lea.sflag [#allocation6], 1
    %1566 = vsyncpa %s1565, 1
    %1567 = vsyncpa [#allocation9], 1
    %s1568 = scalar_lea.sflag [#allocation9], 1
    %1569 = vsyncpa %s1568, 1
    %1570 = vsyncpa [#allocation7], 1
    %s1571 = scalar_lea.sflag [#allocation7], 1
    %1572 = vsyncpa %s1571, 1

</llo_original>
